<compile_context>
chip_gen: v7x
topology: tpu7x:2x2x1
jax: 0.10.0
libtpu: 0.0.40
codegen_flags: <defaults>
</compile_context>

<pallas_src>
import functools

import jax
import jax.numpy as jnp
from jax.experimental import pallas as pl
from jax.experimental.pallas import tpu as pltpu

LANE = 128


def _round_up(n, m):
    return ((n + m - 1) // m) * m


def encoder_kernel(x_ref, c_ref, w1x_ref, w1c_ref, b1_ref, w2_ref, b2_ref, out_ref):
    # fc1: h = relu(x @ W1x + c @ W1c + b1) — bf16 MXU matmuls, f32 accumulate.
    xb = x_ref[...].astype(jnp.bfloat16)
    cb = c_ref[...].astype(jnp.bfloat16)
    h = jnp.dot(xb, w1x_ref[...], preferred_element_type=jnp.float32)
    h = h + jnp.dot(cb, w1c_ref[...], preferred_element_type=jnp.float32)
    h = jnp.maximum(h + b1_ref[...], 0.0)
    # Fused fc_mu | fc_logvar projection -> one lane-dense (bb, 128) store.
    out = jnp.dot(h.astype(jnp.bfloat16), w2_ref[...],
                  preferred_element_type=jnp.float32) + b2_ref[...]
    out_ref[...] = out.astype(out_ref.dtype)


def encoder_forward(x, c, prepared, *, latent_dim):
    """x: (B, input_dim) f32, c: (B, condition_dim) f32 -> (mu, logvar), each (B, latent_dim)."""
    w1x, w1c, b1, w2, b2 = prepared
    B, input_dim = x.shape
    condition_dim = c.shape[1]
    hidden_pad = w1x.shape[1]
    out_pad = w2.shape[1]

    # Batch tiling: single block for small B, 128-row blocks (parallel grid) otherwise.
    bb = min(B, 128)
    b_pad = _round_up(B, bb)
    if b_pad != B:
        x = jnp.pad(x, ((0, b_pad - B), (0, 0)))
        c = jnp.pad(c, ((0, b_pad - B), (0, 0)))
    grid = (b_pad // bb,)

    flops = 2 * b_pad * (input_dim + condition_dim) * hidden_pad \
        + 2 * b_pad * hidden_pad * out_pad
    bytes_accessed = (
        x.size * x.dtype.itemsize + c.size * c.dtype.itemsize
        + sum(a.size * a.dtype.itemsize for a in prepared)
        + b_pad * out_pad * 4)

    out = pl.pallas_call(
        encoder_kernel,
        out_shape=jax.ShapeDtypeStruct((b_pad, out_pad), jnp.float32),
        grid=grid,
        in_specs=[
            pl.BlockSpec((bb, input_dim), lambda i: (i, 0)),
            pl.BlockSpec((bb, condition_dim), lambda i: (i, 0)),
            pl.BlockSpec((input_dim, hidden_pad), lambda i: (0, 0)),
            pl.BlockSpec((condition_dim, hidden_pad), lambda i: (0, 0)),
            pl.BlockSpec((1, hidden_pad), lambda i: (0, 0)),
            pl.BlockSpec((hidden_pad, out_pad), lambda i: (0, 0)),
            pl.BlockSpec((1, out_pad), lambda i: (0, 0)),
        ],
        out_specs=pl.BlockSpec((bb, out_pad), lambda i: (i, 0)),
        compiler_params=pltpu.CompilerParams(dimension_semantics=("parallel",)),
        cost_estimate=pl.CostEstimate(flops=flops, transcendentals=0,
                                      bytes_accessed=bytes_accessed),
    )(x, c, w1x, w1c, b1, w2, b2)

    mu = out[:B, :latent_dim]
    logvar = out[:B, latent_dim:2 * latent_dim]
    return mu, logvar


def init_params(key, input_dim=784, hidden_dim=400, latent_dim=20, condition_dim=10):
    """nn.Linear-style init (uniform +-1/sqrt(fan_in)); weights pre-transposed (in, out), f32."""
    def linear(k, fan_in, fan_out):
        kw, kb = jax.random.split(k)
        bound = 1.0 / jnp.sqrt(fan_in)
        w = jax.random.uniform(kw, (fan_in, fan_out), jnp.float32, -bound, bound)
        b = jax.random.uniform(kb, (1, fan_out), jnp.float32, -bound, bound)
        return w, b

    k1, k2, k3 = jax.random.split(key, 3)
    w1, b1 = linear(k1, input_dim + condition_dim, hidden_dim)
    wmu, bmu = linear(k2, hidden_dim, latent_dim)
    wlv, blv = linear(k3, hidden_dim, latent_dim)
    return (w1, b1, wmu, bmu, wlv, blv)


def prepare_params(params, input_dim, hidden_dim, latent_dim, condition_dim):
    """One-time re-layout: split W1 into x/c halves, zero-pad hidden 400->512 and
    output 2*latent->128 (lane-dense), fuse [Wmu|Wlv], cast weights to bf16."""
    w1, b1, wmu, bmu, wlv, blv = params
    hidden_pad = _round_up(hidden_dim, LANE)      # 400 -> 512 (also 4*128 for v5e MXU)
    out_pad = _round_up(2 * latent_dim, LANE)     # 40 -> 128

    def pad2(a, rows, cols):
        return jnp.pad(a, ((0, rows - a.shape[0]), (0, cols - a.shape[1])))

    w1x = pad2(w1[:input_dim, :], input_dim, hidden_pad).astype(jnp.bfloat16)
    w1c = pad2(w1[input_dim:, :], condition_dim, hidden_pad).astype(jnp.bfloat16)
    b1p = pad2(b1, 1, hidden_pad)                                   # f32
    w2 = pad2(jnp.concatenate([wmu, wlv], axis=1), hidden_pad, out_pad).astype(jnp.bfloat16)
    b2 = pad2(jnp.concatenate([bmu, blv], axis=1), 1, out_pad)      # f32
    return (w1x, w1c, b1p, w2, b2)


if __name__ == "__main__":
    input_dim, hidden_dim, latent_dim, condition_dim = 784, 400, 20, 10
    batch = 8

    key = jax.random.PRNGKey(0)
    kx, kc, kp = jax.random.split(key, 3)
    x = jax.random.normal(kx, (batch, input_dim), jnp.float32)
    labels = jax.random.randint(kc, (batch,), 0, condition_dim)
    c = jax.nn.one_hot(labels, condition_dim, dtype=jnp.float32)

    params = init_params(kp, input_dim, hidden_dim, latent_dim, condition_dim)
    prepared = prepare_params(params, input_dim, hidden_dim, latent_dim, condition_dim)

    fwd = jax.jit(functools.partial(encoder_forward, latent_dim=latent_dim))
    mu, logvar = fwd(x, c, prepared)
    jax.block_until_ready((mu, logvar))

    # Reference 1: exact f32 math of the original PyTorch module (loose tol: weights are bf16).
    w1, b1, wmu, bmu, wlv, blv = params
    xc = jnp.concatenate([x, c], axis=1)
    h_f32 = jnp.maximum(xc @ w1 + b1, 0.0)
    mu_f32 = h_f32 @ wmu + bmu
    lv_f32 = h_f32 @ wlv + blv
    assert jnp.allclose(mu, mu_f32, atol=2e-2, rtol=2e-2), "mu mismatch vs f32 reference"
    assert jnp.allclose(logvar, lv_f32, atol=2e-2, rtol=2e-2), "logvar mismatch vs f32 reference"

    # Reference 2: same bf16-weight / f32-accumulate math in plain JAX (tight tol).
    w1x, w1c, b1p, w2, b2 = prepared
    xb, cb = x.astype(jnp.bfloat16), c.astype(jnp.bfloat16)
    h_ref = jnp.maximum(
        jnp.dot(xb, w1x, preferred_element_type=jnp.float32)
        + jnp.dot(cb, w1c, preferred_element_type=jnp.float32) + b1p, 0.0)
    out_ref = jnp.dot(h_ref.astype(jnp.bfloat16), w2,
                      preferred_element_type=jnp.float32) + b2
    assert jnp.allclose(mu, out_ref[:, :latent_dim], atol=2e-3, rtol=2e-3), "mu mismatch vs bf16 reference"
    assert jnp.allclose(logvar, out_ref[:, latent_dim:2 * latent_dim], atol=2e-3, rtol=2e-3), \
        "logvar mismatch vs bf16 reference"

    assert mu.shape == (batch, latent_dim) and logvar.shape == (batch, latent_dim)
    print("KERNEL_OK")
</pallas_src>

<mosaic_0001>
module attributes {stable_mosaic.version = 11 : i64} {
  func.func @encoder_kernel(%arg0: i32, %arg1: memref<8x784xf32, #tpu.memory_space<vmem>>, %arg2: memref<8x10xf32, #tpu.memory_space<vmem>>, %arg3: memref<784x512xbf16, #tpu.memory_space<vmem>>, %arg4: memref<10x512xbf16, #tpu.memory_space<vmem>>, %arg5: memref<1x512xf32, #tpu.memory_space<vmem>>, %arg6: memref<512x128xbf16, #tpu.memory_space<vmem>>, %arg7: memref<1x128xf32, #tpu.memory_space<vmem>>, %arg8: memref<8x128xf32, #tpu.memory_space<vmem>>) attributes {dimension_semantics = [#tpu.dimension_semantics<parallel>], iteration_bounds = array<i64: 1>, scalar_prefetch = 0 : i64, scratch_operands = 0 : i64, tpu.core_type = #tpu.core_type<tc>, window_params = [{transform_indices = @transform_0, window_bounds = array<i64: 8, 784>}, {transform_indices = @transform_1, window_bounds = array<i64: 8, 10>}, {pipeline_mode = #tpu.pipeline_mode<synchronous>, transform_indices = @transform_2, window_bounds = array<i64: 784, 512>}, {pipeline_mode = #tpu.pipeline_mode<synchronous>, transform_indices = @transform_3, window_bounds = array<i64: 10, 512>}, {pipeline_mode = #tpu.pipeline_mode<synchronous>, transform_indices = @transform_4, window_bounds = array<i64: 1, 512>}, {pipeline_mode = #tpu.pipeline_mode<synchronous>, transform_indices = @transform_5, window_bounds = array<i64: 512, 128>}, {pipeline_mode = #tpu.pipeline_mode<synchronous>, transform_indices = @transform_6, window_bounds = array<i64: 1, 128>}, {transform_indices = @transform_7, window_bounds = array<i64: 8, 128>}]} {
    %c0 = arith.constant 0 : index
    %c0_0 = arith.constant 0 : index
    %0 = vector.load %arg1[%c0, %c0_0] : memref<8x784xf32, #tpu.memory_space<vmem>>, vector<8x784xf32>
    %1 = arith.truncf %0 : vector<8x784xf32> to vector<8x784xbf16>
    %c0_1 = arith.constant 0 : index
    %c0_2 = arith.constant 0 : index
    %2 = vector.load %arg2[%c0_1, %c0_2] : memref<8x10xf32, #tpu.memory_space<vmem>>, vector<8x10xf32>
    %3 = arith.truncf %2 : vector<8x10xf32> to vector<8x10xbf16>
    %c0_3 = arith.constant 0 : index
    %c0_4 = arith.constant 0 : index
    %4 = vector.load %arg3[%c0_3, %c0_4] : memref<784x512xbf16, #tpu.memory_space<vmem>>, vector<784x512xbf16>
    %cst = arith.constant dense<0.000000e+00> : vector<8x512xf32>
    %5 = tpu.matmul %1, %4, %cst {dimension_numbers = #tpu.dot_dimension_numbers<[1], [0], [0], [1], [0, 0, 1, 1], [], []>} : vector<8x784xbf16>, vector<784x512xbf16>, vector<8x512xf32> -> vector<8x512xf32>
    %c0_5 = arith.constant 0 : index
    %c0_6 = arith.constant 0 : index
    %6 = vector.load %arg4[%c0_5, %c0_6] : memref<10x512xbf16, #tpu.memory_space<vmem>>, vector<10x512xbf16>
    %cst_7 = arith.constant dense<0.000000e+00> : vector<8x512xf32>
    %7 = tpu.matmul %3, %6, %cst_7 {dimension_numbers = #tpu.dot_dimension_numbers<[1], [0], [0], [1], [0, 0, 1, 1], [], []>} : vector<8x10xbf16>, vector<10x512xbf16>, vector<8x512xf32> -> vector<8x512xf32>
    %8 = arith.addf %5, %7 : vector<8x512xf32>
    %c0_8 = arith.constant 0 : index
    %c0_9 = arith.constant 0 : index
    %9 = vector.load %arg5[%c0_8, %c0_9] : memref<1x512xf32, #tpu.memory_space<vmem>>, vector<1x512xf32>
    %10 = vector.broadcast %9 : vector<1x512xf32> to vector<8x512xf32>
    %11 = arith.addf %8, %10 : vector<8x512xf32>
    %cst_10 = arith.constant 0.000000e+00 : f32
    %12 = vector.broadcast %cst_10 : f32 to vector<8x512xf32>
    %13 = arith.maximumf %11, %12 : vector<8x512xf32>
    %14 = arith.truncf %13 : vector<8x512xf32> to vector<8x512xbf16>
    %c0_11 = arith.constant 0 : index
    %c0_12 = arith.constant 0 : index
    %15 = vector.load %arg6[%c0_11, %c0_12] : memref<512x128xbf16, #tpu.memory_space<vmem>>, vector<512x128xbf16>
    %cst_13 = arith.constant dense<0.000000e+00> : vector<8x128xf32>
    %16 = tpu.matmul %14, %15, %cst_13 {dimension_numbers = #tpu.dot_dimension_numbers<[1], [0], [0], [1], [0, 0, 1, 1], [], []>} : vector<8x512xbf16>, vector<512x128xbf16>, vector<8x128xf32> -> vector<8x128xf32>
    %c0_14 = arith.constant 0 : index
    %c0_15 = arith.constant 0 : index
    %17 = vector.load %arg7[%c0_14, %c0_15] : memref<1x128xf32, #tpu.memory_space<vmem>>, vector<1x128xf32>
    %18 = vector.broadcast %17 : vector<1x128xf32> to vector<8x128xf32>
    %19 = arith.addf %16, %18 : vector<8x128xf32>
    %c0_16 = arith.constant 0 : index
    %c0_17 = arith.constant 0 : index
    %20 = vector.load %arg8[%c0_16, %c0_17] : memref<8x128xf32, #tpu.memory_space<vmem>>, vector<8x128xf32>
    tpu.vector_store %arg8[%c0_16, %c0_17], %19 {strides = array<i32>} : memref<8x128xf32, #tpu.memory_space<vmem>>, vector<8x128xf32>,
    return
  }
  func.func @transform_0(%arg0: i32) -> (i32, i32) {
    %c0_i32 = arith.constant 0 : i32
    %c0_i32_0 = arith.constant 0 : i32
    return %arg0, %c0_i32 : i32, i32
  }
  func.func @transform_1(%arg0: i32) -> (i32, i32) {
    %c0_i32 = arith.constant 0 : i32
    %c0_i32_0 = arith.constant 0 : i32
    return %arg0, %c0_i32 : i32, i32
  }
  func.func @transform_2(%arg0: i32) -> (i32, i32) {
    %c0_i32 = arith.constant 0 : i32
    %c0_i32_0 = arith.constant 0 : i32
    %c0_i32_1 = arith.constant 0 : i32
    return %c0_i32, %c0_i32_0 : i32, i32
  }
  func.func @transform_3(%arg0: i32) -> (i32, i32) {
    %c0_i32 = arith.constant 0 : i32
    %c0_i32_0 = arith.constant 0 : i32
    %c0_i32_1 = arith.constant 0 : i32
    return %c0_i32, %c0_i32_0 : i32, i32
  }
  func.func @transform_4(%arg0: i32) -> (i32, i32) {
    %c0_i32 = arith.constant 0 : i32
    %c0_i32_0 = arith.constant 0 : i32
    %c0_i32_1 = arith.constant 0 : i32
    return %c0_i32, %c0_i32_0 : i32, i32
  }
  func.func @transform_5(%arg0: i32) -> (i32, i32) {
    %c0_i32 = arith.constant 0 : i32
    %c0_i32_0 = arith.constant 0 : i32
    %c0_i32_1 = arith.constant 0 : i32
    return %c0_i32, %c0_i32_0 : i32, i32
  }
  func.func @transform_6(%arg0: i32) -> (i32, i32) {
    %c0_i32 = arith.constant 0 : i32
    %c0_i32_0 = arith.constant 0 : i32
    %c0_i32_1 = arith.constant 0 : i32
    return %c0_i32, %c0_i32_0 : i32, i32
  }
  func.func @transform_7(%arg0: i32) -> (i32, i32) {
    %c0_i32 = arith.constant 0 : i32
    %c0_i32_0 = arith.constant 0 : i32
    return %arg0, %c0_i32 : i32, i32
  }
}

</mosaic_0001>

<llo_original>
// kernel: encoder_forward.1
$region0: #{encoder_forward.1}
  #allocation0 [shape = 'u32[]', space=smem, size = 0x4, offset = 0x4, fixed_abs, tag = 'smem constant byte address 0x4 - core index']
  #allocation1 [shape = 'u32[144,128]{1,0:T(1,128)}', space=vmem, size = 0x12000, scoped, tag = 'internal scratch']
  %s0 = inlined_call_operand.hbm [shape: f32[8,784], index: 0, kind: input, shape index: {}]
  %s1 = inlined_call_operand.hbm [shape: f32[8,10], index: 1, kind: input, shape index: {}]
  %s2 = inlined_call_operand.hbm [shape: bf16[784,512], index: 2, kind: input, shape index: {}]
  %s3 = inlined_call_operand.hbm [shape: bf16[10,512], index: 3, kind: input, shape index: {}]
  %s4 = inlined_call_operand.vmem [shape: f32[1,512], index: 4, kind: input, shape index: {}]
  %s5 = inlined_call_operand.hbm [shape: bf16[512,128], index: 5, kind: input, shape index: {}]
  %s6 = inlined_call_operand.vmem [shape: f32[1,128], index: 6, kind: input, shape index: {}]
  %s7 = inlined_call_operand.vmem [shape: f32[8,128], index: 7, kind: output, shape index: {}]
  %s8 = sld [smem:[#allocation0]]
  $region58: #{encoder_forward.1} parent=0
    _
  %s10 = ssub.s32 1, %s8
  %s11 = scalar_select 0, %s10, %s8
  $region1: #{encoder_forward.1} parent=0
    #allocation2 [shape = 'u8[28672]{0}', space=vmem, size = 0x7000, scoped, tag = 'input window, operand 0, single buffered']
    #allocation3 [shape = 's32[1]{0}', space=sflag, size = 0x4, scoped, tag = 'scoped memory for encoder_forward.1']
    #allocation4 [shape = 'u8[4096]{0}', space=vmem, size = 0x1000, scoped, tag = 'input window, operand 1, single buffered']
    #allocation5 [shape = 's32[1]{0}', space=sflag, size = 0x4, scoped, tag = 'scoped memory for encoder_forward.1']
    #allocation6 [shape = 'u8[802816]{0}', space=vmem, size = 0xc4000, scoped, tag = 'input window, operand 2, single buffered']
    #allocation7 [shape = 'u8[16384]{0}', space=vmem, size = 0x4000, scoped, tag = 'input window, operand 3, single buffered']
    #allocation8 [shape = 's32[1]{0}', space=sflag, size = 0x4, scoped, tag = 'scoped memory for encoder_forward.1']
    #allocation9 [shape = 'u8[131072]{0}', space=vmem, size = 0x20000, scoped, tag = 'input window, operand 5, single buffered']
    %12 = vsyncpa [#allocation3], 0
    %13 = vsyncpa [#allocation5], 0
    %14 = vsyncpa [#allocation8], 0
    // Predicated region
    $region2: #{encoder_forward.1} parent=1 // pred_check
      _
    $region3: #{encoder_forward.1} parent=1 // pred_check_branch
      %16 = sbr.rel (0) target = $region5
    $region4: #{encoder_forward.1} parent=1 // pred_region
      %s18 = ssub.s32 896, 896
      %19 = vsyncadd [#allocation3], %s18
      %s21 = sshll.u32 [#allocation2], 4
      %s22 = int_to_ptr.vmem [resolvable:$true] %s21
      %24 = dma.hbm_to_vmem [thread:$0]  %s0, 896, %s22, [#allocation3]
    $region5: #{encoder_forward.1} parent=1 // pred_fallthru
      _
    // Predicated region
    $region6: #{encoder_forward.1} parent=1 // pred_check
      _
    $region7: #{encoder_forward.1} parent=1 // pred_check_branch
      %26 = sbr.rel (0) target = $region9
    $region8: #{encoder_forward.1} parent=1 // pred_region
      %s28 = ssub.s32 128, 128
      %29 = vsyncadd [#allocation5], %s28
      %s31 = sshll.u32 [#allocation4], 4
      %s32 = int_to_ptr.vmem [resolvable:$true] %s31
      %34 = dma.hbm_to_vmem [thread:$0]  %s1, 128, %s32, [#allocation5]
    $region9: #{encoder_forward.1} parent=1 // pred_fallthru
      _
    // Predicated region
    $region10: #{encoder_forward.1} parent=1 // pred_check
      _
    $region11: #{encoder_forward.1} parent=1 // pred_check_branch
      %36 = sbr.rel (0) target = $region13
    $region12: #{encoder_forward.1} parent=1 // pred_region
      %s38 = ssub.s32 25088, 25088
      %39 = vsyncadd [#allocation5], %s38
      %s40 = sshll.u32 [#allocation6], 4
      %s41 = int_to_ptr.vmem [resolvable:$true] %s40
      %46 = dma.hbm_to_vmem [thread:$0]  %s2, 25088, %s41, [#allocation5], 256, 256, 16
    $region13: #{encoder_forward.1} parent=1 // pred_fallthru
      _
    // Predicated region
    $region14: #{encoder_forward.1} parent=1 // pred_check
      _
    $region15: #{encoder_forward.1} parent=1 // pred_check_branch
      %48 = sbr.rel (0) target = $region17
    $region16: #{encoder_forward.1} parent=1 // pred_region
      %s50 = ssub.s32 512, 512
      %51 = vsyncadd [#allocation8], %s50
      %s52 = sshll.u32 [#allocation7], 4
      %s53 = int_to_ptr.vmem [resolvable:$true] %s52
      %58 = dma.hbm_to_vmem [thread:$0]  %s3, 512, %s53, [#allocation8], 256, 256, 16
    $region17: #{encoder_forward.1} parent=1 // pred_fallthru
      _
    // Predicated region
    $region18: #{encoder_forward.1} parent=1 // pred_check
      _
    $region19: #{encoder_forward.1} parent=1 // pred_check_branch
      %60 = sbr.rel (0) target = $region21
    $region20: #{encoder_forward.1} parent=1 // pred_region
      _
    $region21: #{encoder_forward.1} parent=1 // pred_fallthru
      _
    // Predicated region
    $region22: #{encoder_forward.1} parent=1 // pred_check
      _
    $region23: #{encoder_forward.1} parent=1 // pred_check_branch
      %62 = sbr.rel (0) target = $region25
    $region24: #{encoder_forward.1} parent=1 // pred_region
      %s64 = ssub.s32 4096, 4096
      %65 = vsyncadd [#allocation8], %s64
      %s66 = sshll.u32 [#allocation9], 4
      %s67 = int_to_ptr.vmem [resolvable:$true] %s66
      %72 = dma.hbm_to_vmem [thread:$0]  %s5, 4096, %s67, [#allocation8], 64, 64, 4
    $region25: #{encoder_forward.1} parent=1 // pred_fallthru
      _
    // Predicated region
    $region26: #{encoder_forward.1} parent=1 // pred_check
      _
    $region27: #{encoder_forward.1} parent=1 // pred_check_branch
      %74 = sbr.rel (0) target = $region29
    $region28: #{encoder_forward.1} parent=1 // pred_region
      _
    $region29: #{encoder_forward.1} parent=1 // pred_fallthru
      _
    // Predicated region
    $region30: #{encoder_forward.1} parent=1 // pred_check
      _
    $region31: #{encoder_forward.1} parent=1 // pred_check_branch
      %76 = sbr.rel (0) target = $region33
    $region32: #{encoder_forward.1} parent=1 // pred_region
      %77 = dma.done [#allocation3], 896
    $region33: #{encoder_forward.1} parent=1 // pred_fallthru
      _
    // Predicated region
    $region34: #{encoder_forward.1} parent=1 // pred_check
      _
    $region35: #{encoder_forward.1} parent=1 // pred_check_branch
      %79 = sbr.rel (0) target = $region37
    $region36: #{encoder_forward.1} parent=1 // pred_region
      %80 = dma.done [#allocation5], 128
    $region37: #{encoder_forward.1} parent=1 // pred_fallthru
      _
    // Predicated region
    $region38: #{encoder_forward.1} parent=1 // pred_check
      _
    $region39: #{encoder_forward.1} parent=1 // pred_check_branch
      %82 = sbr.rel (0) target = $region41
    $region40: #{encoder_forward.1} parent=1 // pred_region
      %83 = dma.done [#allocation5], 25088
    $region41: #{encoder_forward.1} parent=1 // pred_fallthru
      _
    // Predicated region
    $region42: #{encoder_forward.1} parent=1 // pred_check
      _
    $region43: #{encoder_forward.1} parent=1 // pred_check_branch
      %85 = sbr.rel (0) target = $region45
    $region44: #{encoder_forward.1} parent=1 // pred_region
      %86 = dma.done [#allocation8], 512
    $region45: #{encoder_forward.1} parent=1 // pred_fallthru
      _
    // Predicated region
    $region46: #{encoder_forward.1} parent=1 // pred_check
      _
    $region47: #{encoder_forward.1} parent=1 // pred_check_branch
      %88 = sbr.rel (0) target = $region49
    $region48: #{encoder_forward.1} parent=1 // pred_region
      %89 = dma.done [#allocation8], 4096
    $region49: #{encoder_forward.1} parent=1 // pred_fallthru
      _
    %v91 = vld [vmem:[#allocation2] sm:$0xff]
    %v92 = vld [vmem:[#allocation2 + $0x8] sm:$0xff]
    %v93 = vld [vmem:[#allocation2 + $0x10] sm:$0xff]
    %v94 = vld [vmem:[#allocation2 + $0x18] sm:$0xff]
    %v95 = vld [vmem:[#allocation2 + $0x20] sm:$0xff]
    %v96 = vld [vmem:[#allocation2 + $0x28] sm:$0xff]
    %v97 = vld [vmem:[#allocation2 + $0x30] sm:$0xff]
    %v98 = vpack.c.bf16 %v91, %v91
    %v99 = vpack.c.bf16 %v92, %v92
    %v100 = vpack.c.bf16 %v93, %v93
    %v101 = vpack.c.bf16 %v94, %v94
    %v102 = vpack.c.bf16 %v95, %v95
    %v103 = vpack.c.bf16 %v96, %v96
    %v104 = vpack.c.bf16 %v97, %v97
    %v105 = vld [vmem:[#allocation4] sm:$0xff]
    %v106 = vpack.c.bf16 %v105, %v105
    %v107 = vld [vmem:[#allocation6] sm:$0xff]
    %v108 = vld [vmem:[#allocation6 + $0x8] sm:$0xff]
    %v109 = vld [vmem:[#allocation6 + $0x10] sm:$0xff]
    %v110 = vld [vmem:[#allocation6 + $0x18] sm:$0xff]
    %v111 = vld [vmem:[#allocation6 + $0x20] sm:$0xff]
    %v112 = vld [vmem:[#allocation6 + $0x28] sm:$0xff]
    %v113 = vld [vmem:[#allocation6 + $0x30] sm:$0xff]
    %v114 = vld [vmem:[#allocation6 + $0x38] sm:$0xff]
    %v115 = vld [vmem:[#allocation6 + $0x40] sm:$0xff]
    %v116 = vld [vmem:[#allocation6 + $0x48] sm:$0xff]
    %v117 = vld [vmem:[#allocation6 + $0x50] sm:$0xff]
    %v118 = vld [vmem:[#allocation6 + $0x58] sm:$0xff]
    %v119 = vld [vmem:[#allocation6 + $0x60] sm:$0xff]
    %v120 = vld [vmem:[#allocation6 + $0x68] sm:$0xff]
    %v121 = vld [vmem:[#allocation6 + $0x70] sm:$0xff]
    %v122 = vld [vmem:[#allocation6 + $0x78] sm:$0xff]
    %v123 = vld [vmem:[#allocation6 + $0x80] sm:$0xff]
    %v124 = vld [vmem:[#allocation6 + $0x88] sm:$0xff]
    %v125 = vld [vmem:[#allocation6 + $0x90] sm:$0xff]
    %v126 = vld [vmem:[#allocation6 + $0x98] sm:$0xff]
    %v127 = vld [vmem:[#allocation6 + $0xa0] sm:$0xff]
    %v128 = vld [vmem:[#allocation6 + $0xa8] sm:$0xff]
    %v129 = vld [vmem:[#allocation6 + $0xb0] sm:$0xff]
    %v130 = vld [vmem:[#allocation6 + $0xb8] sm:$0xff]
    %v131 = vld [vmem:[#allocation6 + $0xc0] sm:$0xff]
    %v132 = vld [vmem:[#allocation6 + $0xc8] sm:$0xff]
    %v133 = vld [vmem:[#allocation6 + $0xd0] sm:$0xff]
    %v134 = vld [vmem:[#allocation6 + $0xd8] sm:$0xff]
    %v135 = vld [vmem:[#allocation6 + $0xe0] sm:$0xff]
    %v136 = vld [vmem:[#allocation6 + $0xe8] sm:$0xff]
    %v137 = vld [vmem:[#allocation6 + $0xf0] sm:$0xff]
    %v138 = vld [vmem:[#allocation6 + $0xf8] sm:$0xff]
    %v139 = vld [vmem:[#allocation6 + $0x100] sm:$0xff]
    %v140 = vld [vmem:[#allocation6 + $0x108] sm:$0xff]
    %v141 = vld [vmem:[#allocation6 + $0x110] sm:$0xff]
    %v142 = vld [vmem:[#allocation6 + $0x118] sm:$0xff]
    %v143 = vld [vmem:[#allocation6 + $0x120] sm:$0xff]
    %v144 = vld [vmem:[#allocation6 + $0x128] sm:$0xff]
    %v145 = vld [vmem:[#allocation6 + $0x130] sm:$0xff]
    %v146 = vld [vmem:[#allocation6 + $0x138] sm:$0xff]
    %v147 = vld [vmem:[#allocation6 + $0x140] sm:$0xff]
    %v148 = vld [vmem:[#allocation6 + $0x148] sm:$0xff]
    %v149 = vld [vmem:[#allocation6 + $0x150] sm:$0xff]
    %v150 = vld [vmem:[#allocation6 + $0x158] sm:$0xff]
    %v151 = vld [vmem:[#allocation6 + $0x160] sm:$0xff]
    %v152 = vld [vmem:[#allocation6 + $0x168] sm:$0xff]
    %v153 = vld [vmem:[#allocation6 + $0x170] sm:$0xff]
    %v154 = vld [vmem:[#allocation6 + $0x178] sm:$0xff]
    %v155 = vld [vmem:[#allocation6 + $0x180] sm:$0xff]
    %v156 = vld [vmem:[#allocation6 + $0x188] sm:$0xff]
    %v157 = vld [vmem:[#allocation6 + $0x190] sm:$0xff]
    %v158 = vld [vmem:[#allocation6 + $0x198] sm:$0xff]
    %v159 = vld [vmem:[#allocation6 + $0x1a0] sm:$0xff]
    %v160 = vld [vmem:[#allocation6 + $0x1a8] sm:$0xff]
    %v161 = vld [vmem:[#allocation6 + $0x1b0] sm:$0xff]
    %v162 = vld [vmem:[#allocation6 + $0x1b8] sm:$0xff]
    %v163 = vld [vmem:[#allocation6 + $0x1c0] sm:$0xff]
    %v164 = vld [vmem:[#allocation6 + $0x1c8] sm:$0xff]
    %v165 = vld [vmem:[#allocation6 + $0x1d0] sm:$0xff]
    %v166 = vld [vmem:[#allocation6 + $0x1d8] sm:$0xff]
    %v167 = vld [vmem:[#allocation6 + $0x1e0] sm:$0xff]
    %v168 = vld [vmem:[#allocation6 + $0x1e8] sm:$0xff]
    %v169 = vld [vmem:[#allocation6 + $0x1f0] sm:$0xff]
    %v170 = vld [vmem:[#allocation6 + $0x1f8] sm:$0xff]
    %v171 = vld [vmem:[#allocation6 + $0x200] sm:$0xff]
    %v172 = vld [vmem:[#allocation6 + $0x208] sm:$0xff]
    %v173 = vld [vmem:[#allocation6 + $0x210] sm:$0xff]
    %v174 = vld [vmem:[#allocation6 + $0x218] sm:$0xff]
    %v175 = vld [vmem:[#allocation6 + $0x220] sm:$0xff]
    %v176 = vld [vmem:[#allocation6 + $0x228] sm:$0xff]
    %v177 = vld [vmem:[#allocation6 + $0x230] sm:$0xff]
    %v178 = vld [vmem:[#allocation6 + $0x238] sm:$0xff]
    %v179 = vld [vmem:[#allocation6 + $0x240] sm:$0xff]
    %v180 = vld [vmem:[#allocation6 + $0x248] sm:$0xff]
    %v181 = vld [vmem:[#allocation6 + $0x250] sm:$0xff]
    %v182 = vld [vmem:[#allocation6 + $0x258] sm:$0xff]
    %v183 = vld [vmem:[#allocation6 + $0x260] sm:$0xff]
    %v184 = vld [vmem:[#allocation6 + $0x268] sm:$0xff]
    %v185 = vld [vmem:[#allocation6 + $0x270] sm:$0xff]
    %v186 = vld [vmem:[#allocation6 + $0x278] sm:$0xff]
    %v187 = vld [vmem:[#allocation6 + $0x280] sm:$0xff]
    %v188 = vld [vmem:[#allocation6 + $0x288] sm:$0xff]
    %v189 = vld [vmem:[#allocation6 + $0x290] sm:$0xff]
    %v190 = vld [vmem:[#allocation6 + $0x298] sm:$0xff]
    %v191 = vld [vmem:[#allocation6 + $0x2a0] sm:$0xff]
    %v192 = vld [vmem:[#allocation6 + $0x2a8] sm:$0xff]
    %v193 = vld [vmem:[#allocation6 + $0x2b0] sm:$0xff]
    %v194 = vld [vmem:[#allocation6 + $0x2b8] sm:$0xff]
    %v195 = vld [vmem:[#allocation6 + $0x2c0] sm:$0xff]
    %v196 = vld [vmem:[#allocation6 + $0x2c8] sm:$0xff]
    %v197 = vld [vmem:[#allocation6 + $0x2d0] sm:$0xff]
    %v198 = vld [vmem:[#allocation6 + $0x2d8] sm:$0xff]
    %v199 = vld [vmem:[#allocation6 + $0x2e0] sm:$0xff]
    %v200 = vld [vmem:[#allocation6 + $0x2e8] sm:$0xff]
    %v201 = vld [vmem:[#allocation6 + $0x2f0] sm:$0xff]
    %v202 = vld [vmem:[#allocation6 + $0x2f8] sm:$0xff]
    %v203 = vld [vmem:[#allocation6 + $0x300] sm:$0xff]
    %v204 = vld [vmem:[#allocation6 + $0x308] sm:$0xff]
    %v205 = vld [vmem:[#allocation6 + $0x310] sm:$0xff]
    %v206 = vld [vmem:[#allocation6 + $0x318] sm:$0xff]
    %v207 = vld [vmem:[#allocation6 + $0x320] sm:$0xff]
    %v208 = vld [vmem:[#allocation6 + $0x328] sm:$0xff]
    %v209 = vld [vmem:[#allocation6 + $0x330] sm:$0xff]
    %v210 = vld [vmem:[#allocation6 + $0x338] sm:$0xff]
    %v211 = vld [vmem:[#allocation6 + $0x340] sm:$0xff]
    %v212 = vld [vmem:[#allocation6 + $0x348] sm:$0xff]
    %v213 = vld [vmem:[#allocation6 + $0x350] sm:$0xff]
    %v214 = vld [vmem:[#allocation6 + $0x358] sm:$0xff]
    %v215 = vld [vmem:[#allocation6 + $0x360] sm:$0xff]
    %v216 = vld [vmem:[#allocation6 + $0x368] sm:$0xff]
    %v217 = vld [vmem:[#allocation6 + $0x370] sm:$0xff]
    %v218 = vld [vmem:[#allocation6 + $0x378] sm:$0xff]
    %v219 = vld [vmem:[#allocation6 + $0x380] sm:$0xff]
    %v220 = vld [vmem:[#allocation6 + $0x388] sm:$0xff]
    %v221 = vld [vmem:[#allocation6 + $0x390] sm:$0xff]
    %v222 = vld [vmem:[#allocation6 + $0x398] sm:$0xff]
    %v223 = vld [vmem:[#allocation6 + $0x3a0] sm:$0xff]
    %v224 = vld [vmem:[#allocation6 + $0x3a8] sm:$0xff]
    %v225 = vld [vmem:[#allocation6 + $0x3b0] sm:$0xff]
    %v226 = vld [vmem:[#allocation6 + $0x3b8] sm:$0xff]
    %v227 = vld [vmem:[#allocation6 + $0x3c0] sm:$0xff]
    %v228 = vld [vmem:[#allocation6 + $0x3c8] sm:$0xff]
    %v229 = vld [vmem:[#allocation6 + $0x3d0] sm:$0xff]
    %v230 = vld [vmem:[#allocation6 + $0x3d8] sm:$0xff]
    %v231 = vld [vmem:[#allocation6 + $0x3e0] sm:$0xff]
    %v232 = vld [vmem:[#allocation6 + $0x3e8] sm:$0xff]
    %v233 = vld [vmem:[#allocation6 + $0x3f0] sm:$0xff]
    %v234 = vld [vmem:[#allocation6 + $0x3f8] sm:$0xff]
    %v235 = vld [vmem:[#allocation6 + $0x400] sm:$0xff]
    %v236 = vld [vmem:[#allocation6 + $0x408] sm:$0xff]
    %v237 = vld [vmem:[#allocation6 + $0x410] sm:$0xff]
    %v238 = vld [vmem:[#allocation6 + $0x418] sm:$0xff]
    %v239 = vld [vmem:[#allocation6 + $0x420] sm:$0xff]
    %v240 = vld [vmem:[#allocation6 + $0x428] sm:$0xff]
    %v241 = vld [vmem:[#allocation6 + $0x430] sm:$0xff]
    %v242 = vld [vmem:[#allocation6 + $0x438] sm:$0xff]
    %v243 = vld [vmem:[#allocation6 + $0x440] sm:$0xff]
    %v244 = vld [vmem:[#allocation6 + $0x448] sm:$0xff]
    %v245 = vld [vmem:[#allocation6 + $0x450] sm:$0xff]
    %v246 = vld [vmem:[#allocation6 + $0x458] sm:$0xff]
    %v247 = vld [vmem:[#allocation6 + $0x460] sm:$0xff]
    %v248 = vld [vmem:[#allocation6 + $0x468] sm:$0xff]
    %v249 = vld [vmem:[#allocation6 + $0x470] sm:$0xff]
    %v250 = vld [vmem:[#allocation6 + $0x478] sm:$0xff]
    %v251 = vld [vmem:[#allocation6 + $0x480] sm:$0xff]
    %v252 = vld [vmem:[#allocation6 + $0x488] sm:$0xff]
    %v253 = vld [vmem:[#allocation6 + $0x490] sm:$0xff]
    %v254 = vld [vmem:[#allocation6 + $0x498] sm:$0xff]
    %v255 = vld [vmem:[#allocation6 + $0x4a0] sm:$0xff]
    %v256 = vld [vmem:[#allocation6 + $0x4a8] sm:$0xff]
    %v257 = vld [vmem:[#allocation6 + $0x4b0] sm:$0xff]
    %v258 = vld [vmem:[#allocation6 + $0x4b8] sm:$0xff]
    %v259 = vld [vmem:[#allocation6 + $0x4c0] sm:$0xff]
    %v260 = vld [vmem:[#allocation6 + $0x4c8] sm:$0xff]
    %v261 = vld [vmem:[#allocation6 + $0x4d0] sm:$0xff]
    %v262 = vld [vmem:[#allocation6 + $0x4d8] sm:$0xff]
    %v263 = vld [vmem:[#allocation6 + $0x4e0] sm:$0xff]
    %v264 = vld [vmem:[#allocation6 + $0x4e8] sm:$0xff]
    %v265 = vld [vmem:[#allocation6 + $0x4f0] sm:$0xff]
    %v266 = vld [vmem:[#allocation6 + $0x4f8] sm:$0xff]
    %v267 = vld [vmem:[#allocation6 + $0x500] sm:$0xff]
    %v268 = vld [vmem:[#allocation6 + $0x508] sm:$0xff]
    %v269 = vld [vmem:[#allocation6 + $0x510] sm:$0xff]
    %v270 = vld [vmem:[#allocation6 + $0x518] sm:$0xff]
    %v271 = vld [vmem:[#allocation6 + $0x520] sm:$0xff]
    %v272 = vld [vmem:[#allocation6 + $0x528] sm:$0xff]
    %v273 = vld [vmem:[#allocation6 + $0x530] sm:$0xff]
    %v274 = vld [vmem:[#allocation6 + $0x538] sm:$0xff]
    %v275 = vld [vmem:[#allocation6 + $0x540] sm:$0xff]
    %v276 = vld [vmem:[#allocation6 + $0x548] sm:$0xff]
    %v277 = vld [vmem:[#allocation6 + $0x550] sm:$0xff]
    %v278 = vld [vmem:[#allocation6 + $0x558] sm:$0xff]
    %v279 = vld [vmem:[#allocation6 + $0x560] sm:$0xff]
    %v280 = vld [vmem:[#allocation6 + $0x568] sm:$0xff]
    %v281 = vld [vmem:[#allocation6 + $0x570] sm:$0xff]
    %v282 = vld [vmem:[#allocation6 + $0x578] sm:$0xff]
    %v283 = vld [vmem:[#allocation6 + $0x580] sm:$0xff]
    %v284 = vld [vmem:[#allocation6 + $0x588] sm:$0xff]
    %v285 = vld [vmem:[#allocation6 + $0x590] sm:$0xff]
    %v286 = vld [vmem:[#allocation6 + $0x598] sm:$0xff]
    %v287 = vld [vmem:[#allocation6 + $0x5a0] sm:$0xff]
    %v288 = vld [vmem:[#allocation6 + $0x5a8] sm:$0xff]
    %v289 = vld [vmem:[#allocation6 + $0x5b0] sm:$0xff]
    %v290 = vld [vmem:[#allocation6 + $0x5b8] sm:$0xff]
    %v291 = vld [vmem:[#allocation6 + $0x5c0] sm:$0xff]
    %v292 = vld [vmem:[#allocation6 + $0x5c8] sm:$0xff]
    %v293 = vld [vmem:[#allocation6 + $0x5d0] sm:$0xff]
    %v294 = vld [vmem:[#allocation6 + $0x5d8] sm:$0xff]
    %v295 = vld [vmem:[#allocation6 + $0x5e0] sm:$0xff]
    %v296 = vld [vmem:[#allocation6 + $0x5e8] sm:$0xff]
    %v297 = vld [vmem:[#allocation6 + $0x5f0] sm:$0xff]
    %v298 = vld [vmem:[#allocation6 + $0x5f8] sm:$0xff]
    %v299 = vld [vmem:[#allocation6 + $0x600] sm:$0xff]
    %v300 = vld [vmem:[#allocation6 + $0x608] sm:$0xff]
    %v301 = vld [vmem:[#allocation6 + $0x610] sm:$0xff]
    %v302 = vld [vmem:[#allocation6 + $0x618] sm:$0xff]
    %v303 = vld [vmem:[#allocation7] sm:$0xff]
    %v304 = vld [vmem:[#allocation7 + $0x8] sm:$0xff]
    %v305 = vld [vmem:[#allocation7 + $0x10] sm:$0x11]
    %v306 = vld [vmem:[#allocation7 + $0x18] sm:$0x11]
    %v311 = vunpack.c.l.b16 %v303
    %v312 = vunpack.c.h.b16 %v303
    %v313 = vunpack.c.l.b16 %v304
    %v314 = vunpack.c.h.b16 %v304
    %v315 = vunpack.c.l.b16 %v305
    %v316 = vunpack.c.h.b16 %v305
    %v317 = vunpack.c.l.b16 %v306
    %v318 = vunpack.c.h.b16 %v306
    %v319 = vpack.c.b16 %v315, %v311
    %v320 = vpack.c.b16 %v316, %v312
    %v321 = vpack.c.b16 %v317, %v313
    %v322 = vpack.c.b16 %v318, %v314
    %vm323 = vcmask 80896
    %v325 = vsel %vm323, %v106, 0
    %vm327 = vcmask 1044480
    %v329 = vsel %vm327, %v319, 0
    %v332 = vsel %vm327, %v320, 0
    %v335 = vsel %vm327, %v321, 0
    %v338 = vsel %vm327, %v322, 0
    %340 = vmatprep.subr.bf16.mxu0 %v332
    %341 = vmatpush1.bf16.msra.mxu0 %v329
    %342 = vmatprep.subr.bf16.mxu0 0
    %343 = vmatpush1.bf16.msra.mxu0 0
    %344 = vmatprep.subr.bf16.mxu0 0
    %345 = vmatpush1.bf16.msra.mxu0 0
    %346 = vmatprep.subr.bf16.mxu0 0
    %347 = vmatpush1.bf16.msra.mxu0 0
    %348 = vmatprep.subr.bf16.mxu0 0
    %349 = vmatpush1.bf16.msra.mxu0 0
    %350 = vmatprep.subr.bf16.mxu0 0
    %351 = vmatpush1.bf16.msra.mxu0 0
    %352 = vmatprep.subr.bf16.mxu0 0
    %353 = vmatpush1.bf16.msra.mxu0 0
    %354 = vmatprep.subr.bf16.mxu0 0
    %355 = vmatpush1.bf16.msra.mxu0 0
    %356 = vmatprep.subr.bf16.mxu0 0
    %357 = vmatpush1.bf16.msra.mxu0 0
    %358 = vmatprep.subr.bf16.mxu0 0
    %359 = vmatpush1.bf16.msra.mxu0 0
    %360 = vmatprep.subr.bf16.mxu0 0
    %361 = vmatpush1.bf16.msra.mxu0 0
    %362 = vmatprep.subr.bf16.mxu0 0
    %363 = vmatpush1.bf16.msra.mxu0 0
    %364 = vmatprep.subr.bf16.mxu0 0
    %365 = vmatpush1.bf16.msra.mxu0 0
    %366 = vmatprep.subr.bf16.mxu0 0
    %367 = vmatpush1.bf16.msra.mxu0 0
    %368 = vmatprep.subr.bf16.mxu0 0
    %369 = vmatpush1.bf16.msra.mxu0 0
    %370 = vmatprep.subr.bf16.mxu0 0
    %371 = vmatpush1.bf16.msra.mxu0 0
    %372 = vmatprep.mubr.bf16.mxu0 0
    %373 = vmatmul.mubr.bf16.gmra.mrb[0].mxu0 %v325
    %v374 = vpop.f32.mrb[0].mxu0
    %v375 = vadd.f32 0.0, %v374
    %v376 = vpop.f32.mrb[0].mxu0
    %v377 = vadd.f32 0.0, %v376
    %v378 = vpop.f32.mrb[0].mxu0
    %v379 = vpop.f32.mrb[0].mxu0
    %380 = vdwg.mxu0
    %381 = vmatprep.subr.bf16.mxu0 %v338
    %382 = vmatpush1.bf16.msra.mxu0 %v335
    %383 = vmatprep.subr.bf16.mxu0 0
    %384 = vmatpush1.bf16.msra.mxu0 0
    %385 = vmatprep.subr.bf16.mxu0 0
    %386 = vmatpush1.bf16.msra.mxu0 0
    %387 = vmatprep.subr.bf16.mxu0 0
    %388 = vmatpush1.bf16.msra.mxu0 0
    %389 = vmatprep.subr.bf16.mxu0 0
    %390 = vmatpush1.bf16.msra.mxu0 0
    %391 = vmatprep.subr.bf16.mxu0 0
    %392 = vmatpush1.bf16.msra.mxu0 0
    %393 = vmatprep.subr.bf16.mxu0 0
    %394 = vmatpush1.bf16.msra.mxu0 0
    %395 = vmatprep.subr.bf16.mxu0 0
    %396 = vmatpush1.bf16.msra.mxu0 0
    %397 = vmatprep.subr.bf16.mxu0 0
    %398 = vmatpush1.bf16.msra.mxu0 0
    %399 = vmatprep.subr.bf16.mxu0 0
    %400 = vmatpush1.bf16.msra.mxu0 0
    %401 = vmatprep.subr.bf16.mxu0 0
    %402 = vmatpush1.bf16.msra.mxu0 0
    %403 = vmatprep.subr.bf16.mxu0 0
    %404 = vmatpush1.bf16.msra.mxu0 0
    %405 = vmatprep.subr.bf16.mxu0 0
    %406 = vmatpush1.bf16.msra.mxu0 0
    %407 = vmatprep.subr.bf16.mxu0 0
    %408 = vmatpush1.bf16.msra.mxu0 0
    %409 = vmatprep.subr.bf16.mxu0 0
    %410 = vmatpush1.bf16.msra.mxu0 0
    %411 = vmatprep.subr.bf16.mxu0 0
    %412 = vmatpush1.bf16.msra.mxu0 0
    %413 = vmatprep.mubr.bf16.mxu0 0
    %414 = vmatmul.mubr.bf16.gmra.mrb[0].mxu0 %v325
    %v415 = vpop.f32.mrb[0].mxu0
    %v416 = vadd.f32 0.0, %v415
    %v417 = vpop.f32.mrb[0].mxu0
    %v418 = vadd.f32 0.0, %v417
    %v419 = vpop.f32.mrb[0].mxu0
    %v420 = vpop.f32.mrb[0].mxu0
    %421 = vdwg.mxu0
    %v618 = vunpack.c.l.b16 %v107
    %v619 = vunpack.c.h.b16 %v107
    %v620 = vunpack.c.l.b16 %v108
    %v621 = vunpack.c.h.b16 %v108
    %v622 = vunpack.c.l.b16 %v109
    %v623 = vunpack.c.h.b16 %v109
    %v624 = vunpack.c.l.b16 %v110
    %v625 = vunpack.c.h.b16 %v110
    %v626 = vunpack.c.l.b16 %v111
    %v627 = vunpack.c.h.b16 %v111
    %v628 = vunpack.c.l.b16 %v112
    %v629 = vunpack.c.h.b16 %v112
    %v630 = vunpack.c.l.b16 %v113
    %v631 = vunpack.c.h.b16 %v113
    %v632 = vunpack.c.l.b16 %v114
    %v633 = vunpack.c.h.b16 %v114
    %v634 = vunpack.c.l.b16 %v115
    %v635 = vunpack.c.h.b16 %v115
    %v636 = vunpack.c.l.b16 %v116
    %v637 = vunpack.c.h.b16 %v116
    %v638 = vunpack.c.l.b16 %v117
    %v639 = vunpack.c.h.b16 %v117
    %v640 = vunpack.c.l.b16 %v118
    %v641 = vunpack.c.h.b16 %v118
    %v642 = vunpack.c.l.b16 %v119
    %v643 = vunpack.c.h.b16 %v119
    %v644 = vunpack.c.l.b16 %v120
    %v645 = vunpack.c.h.b16 %v120
    %v646 = vunpack.c.l.b16 %v121
    %v647 = vunpack.c.h.b16 %v121
    %v648 = vunpack.c.l.b16 %v122
    %v649 = vunpack.c.h.b16 %v122
    %v650 = vunpack.c.l.b16 %v123
    %v651 = vunpack.c.h.b16 %v123
    %v652 = vunpack.c.l.b16 %v124
    %v653 = vunpack.c.h.b16 %v124
    %v654 = vunpack.c.l.b16 %v125
    %v655 = vunpack.c.h.b16 %v125
    %v656 = vunpack.c.l.b16 %v126
    %v657 = vunpack.c.h.b16 %v126
    %v658 = vunpack.c.l.b16 %v127
    %v659 = vunpack.c.h.b16 %v127
    %v660 = vunpack.c.l.b16 %v128
    %v661 = vunpack.c.h.b16 %v128
    %v662 = vunpack.c.l.b16 %v129
    %v663 = vunpack.c.h.b16 %v129
    %v664 = vunpack.c.l.b16 %v130
    %v665 = vunpack.c.h.b16 %v130
    %v666 = vunpack.c.l.b16 %v131
    %v667 = vunpack.c.h.b16 %v131
    %v668 = vunpack.c.l.b16 %v132
    %v669 = vunpack.c.h.b16 %v132
    %v670 = vunpack.c.l.b16 %v133
    %v671 = vunpack.c.h.b16 %v133
    %v672 = vunpack.c.l.b16 %v134
    %v673 = vunpack.c.h.b16 %v134
    %v674 = vunpack.c.l.b16 %v135
    %v675 = vunpack.c.h.b16 %v135
    %v676 = vunpack.c.l.b16 %v136
    %v677 = vunpack.c.h.b16 %v136
    %v678 = vunpack.c.l.b16 %v137
    %v679 = vunpack.c.h.b16 %v137
    %v680 = vunpack.c.l.b16 %v138
    %v681 = vunpack.c.h.b16 %v138
    %v682 = vunpack.c.l.b16 %v139
    %v683 = vunpack.c.h.b16 %v139
    %v684 = vunpack.c.l.b16 %v140
    %v685 = vunpack.c.h.b16 %v140
    %v686 = vunpack.c.l.b16 %v141
    %v687 = vunpack.c.h.b16 %v141
    %v688 = vunpack.c.l.b16 %v142
    %v689 = vunpack.c.h.b16 %v142
    %v690 = vunpack.c.l.b16 %v143
    %v691 = vunpack.c.h.b16 %v143
    %v692 = vunpack.c.l.b16 %v144
    %v693 = vunpack.c.h.b16 %v144
    %v694 = vunpack.c.l.b16 %v145
    %v695 = vunpack.c.h.b16 %v145
    %v696 = vunpack.c.l.b16 %v146
    %v697 = vunpack.c.h.b16 %v146
    %v698 = vunpack.c.l.b16 %v147
    %v699 = vunpack.c.h.b16 %v147
    %v700 = vunpack.c.l.b16 %v148
    %v701 = vunpack.c.h.b16 %v148
    %v702 = vunpack.c.l.b16 %v149
    %v703 = vunpack.c.h.b16 %v149
    %v704 = vunpack.c.l.b16 %v150
    %v705 = vunpack.c.h.b16 %v150
    %v706 = vunpack.c.l.b16 %v151
    %v707 = vunpack.c.h.b16 %v151
    %v708 = vunpack.c.l.b16 %v152
    %v709 = vunpack.c.h.b16 %v152
    %v710 = vunpack.c.l.b16 %v153
    %v711 = vunpack.c.h.b16 %v153
    %v712 = vunpack.c.l.b16 %v154
    %v713 = vunpack.c.h.b16 %v154
    %v714 = vunpack.c.l.b16 %v155
    %v715 = vunpack.c.h.b16 %v155
    %v716 = vunpack.c.l.b16 %v156
    %v717 = vunpack.c.h.b16 %v156
    %v718 = vunpack.c.l.b16 %v157
    %v719 = vunpack.c.h.b16 %v157
    %v720 = vunpack.c.l.b16 %v158
    %v721 = vunpack.c.h.b16 %v158
    %v722 = vunpack.c.l.b16 %v159
    %v723 = vunpack.c.h.b16 %v159
    %v724 = vunpack.c.l.b16 %v160
    %v725 = vunpack.c.h.b16 %v160
    %v726 = vunpack.c.l.b16 %v161
    %v727 = vunpack.c.h.b16 %v161
    %v728 = vunpack.c.l.b16 %v162
    %v729 = vunpack.c.h.b16 %v162
    %v730 = vunpack.c.l.b16 %v163
    %v731 = vunpack.c.h.b16 %v163
    %v732 = vunpack.c.l.b16 %v164
    %v733 = vunpack.c.h.b16 %v164
    %v734 = vunpack.c.l.b16 %v165
    %v735 = vunpack.c.h.b16 %v165
    %v736 = vunpack.c.l.b16 %v166
    %v737 = vunpack.c.h.b16 %v166
    %v738 = vunpack.c.l.b16 %v167
    %v739 = vunpack.c.h.b16 %v167
    %v740 = vunpack.c.l.b16 %v168
    %v741 = vunpack.c.h.b16 %v168
    %v742 = vunpack.c.l.b16 %v169
    %v743 = vunpack.c.h.b16 %v169
    %v744 = vunpack.c.l.b16 %v170
    %v745 = vunpack.c.h.b16 %v170
    %v746 = vunpack.c.l.b16 %v171
    %v747 = vunpack.c.h.b16 %v171
    %v748 = vunpack.c.l.b16 %v172
    %v749 = vunpack.c.h.b16 %v172
    %v750 = vunpack.c.l.b16 %v173
    %v751 = vunpack.c.h.b16 %v173
    %v752 = vunpack.c.l.b16 %v174
    %v753 = vunpack.c.h.b16 %v174
    %v754 = vunpack.c.l.b16 %v175
    %v755 = vunpack.c.h.b16 %v175
    %v756 = vunpack.c.l.b16 %v176
    %v757 = vunpack.c.h.b16 %v176
    %v758 = vunpack.c.l.b16 %v177
    %v759 = vunpack.c.h.b16 %v177
    %v760 = vunpack.c.l.b16 %v178
    %v761 = vunpack.c.h.b16 %v178
    %v762 = vunpack.c.l.b16 %v179
    %v763 = vunpack.c.h.b16 %v179
    %v764 = vunpack.c.l.b16 %v180
    %v765 = vunpack.c.h.b16 %v180
    %v766 = vunpack.c.l.b16 %v181
    %v767 = vunpack.c.h.b16 %v181
    %v768 = vunpack.c.l.b16 %v182
    %v769 = vunpack.c.h.b16 %v182
    %v770 = vunpack.c.l.b16 %v183
    %v771 = vunpack.c.h.b16 %v183
    %v772 = vunpack.c.l.b16 %v184
    %v773 = vunpack.c.h.b16 %v184
    %v774 = vunpack.c.l.b16 %v185
    %v775 = vunpack.c.h.b16 %v185
    %v776 = vunpack.c.l.b16 %v186
    %v777 = vunpack.c.h.b16 %v186
    %v778 = vunpack.c.l.b16 %v187
    %v779 = vunpack.c.h.b16 %v187
    %v780 = vunpack.c.l.b16 %v188
    %v781 = vunpack.c.h.b16 %v188
    %v782 = vunpack.c.l.b16 %v189
    %v783 = vunpack.c.h.b16 %v189
    %v784 = vunpack.c.l.b16 %v190
    %v785 = vunpack.c.h.b16 %v190
    %v786 = vunpack.c.l.b16 %v191
    %v787 = vunpack.c.h.b16 %v191
    %v788 = vunpack.c.l.b16 %v192
    %v789 = vunpack.c.h.b16 %v192
    %v790 = vunpack.c.l.b16 %v193
    %v791 = vunpack.c.h.b16 %v193
    %v792 = vunpack.c.l.b16 %v194
    %v793 = vunpack.c.h.b16 %v194
    %v794 = vunpack.c.l.b16 %v195
    %v795 = vunpack.c.h.b16 %v195
    %v796 = vunpack.c.l.b16 %v196
    %v797 = vunpack.c.h.b16 %v196
    %v798 = vunpack.c.l.b16 %v197
    %v799 = vunpack.c.h.b16 %v197
    %v800 = vunpack.c.l.b16 %v198
    %v801 = vunpack.c.h.b16 %v198
    %v802 = vunpack.c.l.b16 %v199
    %v803 = vunpack.c.h.b16 %v199
    %v804 = vunpack.c.l.b16 %v200
    %v805 = vunpack.c.h.b16 %v200
    %v806 = vunpack.c.l.b16 %v201
    %v807 = vunpack.c.h.b16 %v201
    %v808 = vunpack.c.l.b16 %v202
    %v809 = vunpack.c.h.b16 %v202
    %v810 = vunpack.c.l.b16 %v203
    %v811 = vunpack.c.h.b16 %v203
    %v812 = vunpack.c.l.b16 %v204
    %v813 = vunpack.c.h.b16 %v204
    %v814 = vunpack.c.l.b16 %v205
    %v815 = vunpack.c.h.b16 %v205
    %v816 = vunpack.c.l.b16 %v206
    %v817 = vunpack.c.h.b16 %v206
    %v818 = vunpack.c.l.b16 %v207
    %v819 = vunpack.c.h.b16 %v207
    %v820 = vunpack.c.l.b16 %v208
    %v821 = vunpack.c.h.b16 %v208
    %v822 = vunpack.c.l.b16 %v209
    %v823 = vunpack.c.h.b16 %v209
    %v824 = vunpack.c.l.b16 %v210
    %v825 = vunpack.c.h.b16 %v210
    %v826 = vunpack.c.l.b16 %v211
    %v827 = vunpack.c.h.b16 %v211
    %v828 = vunpack.c.l.b16 %v212
    %v829 = vunpack.c.h.b16 %v212
    %v830 = vunpack.c.l.b16 %v213
    %v831 = vunpack.c.h.b16 %v213
    %v832 = vunpack.c.l.b16 %v214
    %v833 = vunpack.c.h.b16 %v214
    %v834 = vunpack.c.l.b16 %v215
    %v835 = vunpack.c.h.b16 %v215
    %v836 = vunpack.c.l.b16 %v216
    %v837 = vunpack.c.h.b16 %v216
    %v838 = vunpack.c.l.b16 %v217
    %v839 = vunpack.c.h.b16 %v217
    %v840 = vunpack.c.l.b16 %v218
    %v841 = vunpack.c.h.b16 %v218
    %v842 = vunpack.c.l.b16 %v219
    %v843 = vunpack.c.h.b16 %v219
    %v844 = vunpack.c.l.b16 %v220
    %v845 = vunpack.c.h.b16 %v220
    %v846 = vunpack.c.l.b16 %v221
    %v847 = vunpack.c.h.b16 %v221
    %v848 = vunpack.c.l.b16 %v222
    %v849 = vunpack.c.h.b16 %v222
    %v850 = vunpack.c.l.b16 %v223
    %v851 = vunpack.c.h.b16 %v223
    %v852 = vunpack.c.l.b16 %v224
    %v853 = vunpack.c.h.b16 %v224
    %v854 = vunpack.c.l.b16 %v225
    %v855 = vunpack.c.h.b16 %v225
    %v856 = vunpack.c.l.b16 %v226
    %v857 = vunpack.c.h.b16 %v226
    %v858 = vunpack.c.l.b16 %v227
    %v859 = vunpack.c.h.b16 %v227
    %v860 = vunpack.c.l.b16 %v228
    %v861 = vunpack.c.h.b16 %v228
    %v862 = vunpack.c.l.b16 %v229
    %v863 = vunpack.c.h.b16 %v229
    %v864 = vunpack.c.l.b16 %v230
    %v865 = vunpack.c.h.b16 %v230
    %v866 = vunpack.c.l.b16 %v231
    %v867 = vunpack.c.h.b16 %v231
    %v868 = vunpack.c.l.b16 %v232
    %v869 = vunpack.c.h.b16 %v232
    %v870 = vunpack.c.l.b16 %v233
    %v871 = vunpack.c.h.b16 %v233
    %v872 = vunpack.c.l.b16 %v234
    %v873 = vunpack.c.h.b16 %v234
    %v874 = vunpack.c.l.b16 %v235
    %v875 = vunpack.c.h.b16 %v235
    %v876 = vunpack.c.l.b16 %v236
    %v877 = vunpack.c.h.b16 %v236
    %v878 = vunpack.c.l.b16 %v237
    %v879 = vunpack.c.h.b16 %v237
    %v880 = vunpack.c.l.b16 %v238
    %v881 = vunpack.c.h.b16 %v238
    %v882 = vunpack.c.l.b16 %v239
    %v883 = vunpack.c.h.b16 %v239
    %v884 = vunpack.c.l.b16 %v240
    %v885 = vunpack.c.h.b16 %v240
    %v886 = vunpack.c.l.b16 %v241
    %v887 = vunpack.c.h.b16 %v241
    %v888 = vunpack.c.l.b16 %v242
    %v889 = vunpack.c.h.b16 %v242
    %v890 = vunpack.c.l.b16 %v243
    %v891 = vunpack.c.h.b16 %v243
    %v892 = vunpack.c.l.b16 %v244
    %v893 = vunpack.c.h.b16 %v244
    %v894 = vunpack.c.l.b16 %v245
    %v895 = vunpack.c.h.b16 %v245
    %v896 = vunpack.c.l.b16 %v246
    %v897 = vunpack.c.h.b16 %v246
    %v898 = vunpack.c.l.b16 %v247
    %v899 = vunpack.c.h.b16 %v247
    %v900 = vunpack.c.l.b16 %v248
    %v901 = vunpack.c.h.b16 %v248
    %v902 = vunpack.c.l.b16 %v249
    %v903 = vunpack.c.h.b16 %v249
    %v904 = vunpack.c.l.b16 %v250
    %v905 = vunpack.c.h.b16 %v250
    %v906 = vunpack.c.l.b16 %v251
    %v907 = vunpack.c.h.b16 %v251
    %v908 = vunpack.c.l.b16 %v252
    %v909 = vunpack.c.h.b16 %v252
    %v910 = vunpack.c.l.b16 %v253
    %v911 = vunpack.c.h.b16 %v253
    %v912 = vunpack.c.l.b16 %v254
    %v913 = vunpack.c.h.b16 %v254
    %v914 = vunpack.c.l.b16 %v255
    %v915 = vunpack.c.h.b16 %v255
    %v916 = vunpack.c.l.b16 %v256
    %v917 = vunpack.c.h.b16 %v256
    %v918 = vunpack.c.l.b16 %v257
    %v919 = vunpack.c.h.b16 %v257
    %v920 = vunpack.c.l.b16 %v258
    %v921 = vunpack.c.h.b16 %v258
    %v922 = vunpack.c.l.b16 %v259
    %v923 = vunpack.c.h.b16 %v259
    %v924 = vunpack.c.l.b16 %v260
    %v925 = vunpack.c.h.b16 %v260
    %v926 = vunpack.c.l.b16 %v261
    %v927 = vunpack.c.h.b16 %v261
    %v928 = vunpack.c.l.b16 %v262
    %v929 = vunpack.c.h.b16 %v262
    %v930 = vunpack.c.l.b16 %v263
    %v931 = vunpack.c.h.b16 %v263
    %v932 = vunpack.c.l.b16 %v264
    %v933 = vunpack.c.h.b16 %v264
    %v934 = vunpack.c.l.b16 %v265
    %v935 = vunpack.c.h.b16 %v265
    %v936 = vunpack.c.l.b16 %v266
    %v937 = vunpack.c.h.b16 %v266
    %v938 = vunpack.c.l.b16 %v267
    %v939 = vunpack.c.h.b16 %v267
    %v940 = vunpack.c.l.b16 %v268
    %v941 = vunpack.c.h.b16 %v268
    %v942 = vunpack.c.l.b16 %v269
    %v943 = vunpack.c.h.b16 %v269
    %v944 = vunpack.c.l.b16 %v270
    %v945 = vunpack.c.h.b16 %v270
    %v946 = vunpack.c.l.b16 %v271
    %v947 = vunpack.c.h.b16 %v271
    %v948 = vunpack.c.l.b16 %v272
    %v949 = vunpack.c.h.b16 %v272
    %v950 = vunpack.c.l.b16 %v273
    %v951 = vunpack.c.h.b16 %v273
    %v952 = vunpack.c.l.b16 %v274
    %v953 = vunpack.c.h.b16 %v274
    %v954 = vunpack.c.l.b16 %v275
    %v955 = vunpack.c.h.b16 %v275
    %v956 = vunpack.c.l.b16 %v276
    %v957 = vunpack.c.h.b16 %v276
    %v958 = vunpack.c.l.b16 %v277
    %v959 = vunpack.c.h.b16 %v277
    %v960 = vunpack.c.l.b16 %v278
    %v961 = vunpack.c.h.b16 %v278
    %v962 = vunpack.c.l.b16 %v279
    %v963 = vunpack.c.h.b16 %v279
    %v964 = vunpack.c.l.b16 %v280
    %v965 = vunpack.c.h.b16 %v280
    %v966 = vunpack.c.l.b16 %v281
    %v967 = vunpack.c.h.b16 %v281
    %v968 = vunpack.c.l.b16 %v282
    %v969 = vunpack.c.h.b16 %v282
    %v970 = vunpack.c.l.b16 %v283
    %v971 = vunpack.c.h.b16 %v283
    %v972 = vunpack.c.l.b16 %v284
    %v973 = vunpack.c.h.b16 %v284
    %v974 = vunpack.c.l.b16 %v285
    %v975 = vunpack.c.h.b16 %v285
    %v976 = vunpack.c.l.b16 %v286
    %v977 = vunpack.c.h.b16 %v286
    %v978 = vunpack.c.l.b16 %v287
    %v979 = vunpack.c.h.b16 %v287
    %v980 = vunpack.c.l.b16 %v288
    %v981 = vunpack.c.h.b16 %v288
    %v982 = vunpack.c.l.b16 %v289
    %v983 = vunpack.c.h.b16 %v289
    %v984 = vunpack.c.l.b16 %v290
    %v985 = vunpack.c.h.b16 %v290
    %v986 = vunpack.c.l.b16 %v291
    %v987 = vunpack.c.h.b16 %v291
    %v988 = vunpack.c.l.b16 %v292
    %v989 = vunpack.c.h.b16 %v292
    %v990 = vunpack.c.l.b16 %v293
    %v991 = vunpack.c.h.b16 %v293
    %v992 = vunpack.c.l.b16 %v294
    %v993 = vunpack.c.h.b16 %v294
    %v994 = vunpack.c.l.b16 %v295
    %v995 = vunpack.c.h.b16 %v295
    %v996 = vunpack.c.l.b16 %v296
    %v997 = vunpack.c.h.b16 %v296
    %v998 = vunpack.c.l.b16 %v297
    %v999 = vunpack.c.h.b16 %v297
    %v1000 = vunpack.c.l.b16 %v298
    %v1001 = vunpack.c.h.b16 %v298
    %v1002 = vunpack.c.l.b16 %v299
    %v1003 = vunpack.c.h.b16 %v299
    %v1004 = vunpack.c.l.b16 %v300
    %v1005 = vunpack.c.h.b16 %v300
    %v1006 = vunpack.c.l.b16 %v301
    %v1007 = vunpack.c.h.b16 %v301
    %v1008 = vunpack.c.l.b16 %v302
    %v1009 = vunpack.c.h.b16 %v302
    %v1010 = vpack.c.b16 %v622, %v618
    %v1011 = vpack.c.b16 %v623, %v619
    %v1012 = vpack.c.b16 %v624, %v620
    %v1013 = vpack.c.b16 %v625, %v621
    %v1014 = vpack.c.b16 %v630, %v626
    %v1015 = vpack.c.b16 %v631, %v627
    %v1016 = vpack.c.b16 %v632, %v628
    %v1017 = vpack.c.b16 %v633, %v629
    %v1018 = vpack.c.b16 %v638, %v634
    %v1019 = vpack.c.b16 %v639, %v635
    %v1020 = vpack.c.b16 %v640, %v636
    %v1021 = vpack.c.b16 %v641, %v637
    %v1022 = vpack.c.b16 %v646, %v642
    %v1023 = vpack.c.b16 %v647, %v643
    %v1024 = vpack.c.b16 %v648, %v644
    %v1025 = vpack.c.b16 %v649, %v645
    %v1026 = vpack.c.b16 %v654, %v650
    %v1027 = vpack.c.b16 %v655, %v651
    %v1028 = vpack.c.b16 %v656, %v652
    %v1029 = vpack.c.b16 %v657, %v653
    %v1030 = vpack.c.b16 %v662, %v658
    %v1031 = vpack.c.b16 %v663, %v659
    %v1032 = vpack.c.b16 %v664, %v660
    %v1033 = vpack.c.b16 %v665, %v661
    %v1034 = vpack.c.b16 %v670, %v666
    %v1035 = vpack.c.b16 %v671, %v667
    %v1036 = vpack.c.b16 %v672, %v668
    %v1037 = vpack.c.b16 %v673, %v669
    %v1038 = vpack.c.b16 %v678, %v674
    %v1039 = vpack.c.b16 %v679, %v675
    %v1040 = vpack.c.b16 %v680, %v676
    %v1041 = vpack.c.b16 %v681, %v677
    %v1042 = vpack.c.b16 %v686, %v682
    %v1043 = vpack.c.b16 %v687, %v683
    %v1044 = vpack.c.b16 %v688, %v684
    %v1045 = vpack.c.b16 %v689, %v685
    %v1046 = vpack.c.b16 %v694, %v690
    %v1047 = vpack.c.b16 %v695, %v691
    %v1048 = vpack.c.b16 %v696, %v692
    %v1049 = vpack.c.b16 %v697, %v693
    %v1050 = vpack.c.b16 %v702, %v698
    %v1051 = vpack.c.b16 %v703, %v699
    %v1052 = vpack.c.b16 %v704, %v700
    %v1053 = vpack.c.b16 %v705, %v701
    %v1054 = vpack.c.b16 %v710, %v706
    %v1055 = vpack.c.b16 %v711, %v707
    %v1056 = vpack.c.b16 %v712, %v708
    %v1057 = vpack.c.b16 %v713, %v709
    %v1058 = vpack.c.b16 %v718, %v714
    %v1059 = vpack.c.b16 %v719, %v715
    %v1060 = vpack.c.b16 %v720, %v716
    %v1061 = vpack.c.b16 %v721, %v717
    %v1062 = vpack.c.b16 %v726, %v722
    %v1063 = vpack.c.b16 %v727, %v723
    %v1064 = vpack.c.b16 %v728, %v724
    %v1065 = vpack.c.b16 %v729, %v725
    %v1066 = vpack.c.b16 %v734, %v730
    %v1067 = vpack.c.b16 %v735, %v731
    %v1068 = vpack.c.b16 %v736, %v732
    %v1069 = vpack.c.b16 %v737, %v733
    %v1070 = vpack.c.b16 %v742, %v738
    %v1071 = vpack.c.b16 %v743, %v739
    %v1072 = vpack.c.b16 %v744, %v740
    %v1073 = vpack.c.b16 %v745, %v741
    %v1074 = vpack.c.b16 %v750, %v746
    %v1075 = vpack.c.b16 %v751, %v747
    %v1076 = vpack.c.b16 %v752, %v748
    %v1077 = vpack.c.b16 %v753, %v749
    %v1078 = vpack.c.b16 %v758, %v754
    %v1079 = vpack.c.b16 %v759, %v755
    %v1080 = vpack.c.b16 %v760, %v756
    %v1081 = vpack.c.b16 %v761, %v757
    %v1082 = vpack.c.b16 %v766, %v762
    %v1083 = vpack.c.b16 %v767, %v763
    %v1084 = vpack.c.b16 %v768, %v764
    %v1085 = vpack.c.b16 %v769, %v765
    %v1086 = vpack.c.b16 %v774, %v770
    %v1087 = vpack.c.b16 %v775, %v771
    %v1088 = vpack.c.b16 %v776, %v772
    %v1089 = vpack.c.b16 %v777, %v773
    %v1090 = vpack.c.b16 %v782, %v778
    %v1091 = vpack.c.b16 %v783, %v779
    %v1092 = vpack.c.b16 %v784, %v780
    %v1093 = vpack.c.b16 %v785, %v781
    %v1094 = vpack.c.b16 %v790, %v786
    %v1095 = vpack.c.b16 %v791, %v787
    %v1096 = vpack.c.b16 %v792, %v788
    %v1097 = vpack.c.b16 %v793, %v789
    %v1098 = vpack.c.b16 %v798, %v794
    %v1099 = vpack.c.b16 %v799, %v795
    %v1100 = vpack.c.b16 %v800, %v796
    %v1101 = vpack.c.b16 %v801, %v797
    %v1102 = vpack.c.b16 %v806, %v802
    %v1103 = vpack.c.b16 %v807, %v803
    %v1104 = vpack.c.b16 %v808, %v804
    %v1105 = vpack.c.b16 %v809, %v805
    %v1106 = vpack.c.b16 %v814, %v810
    %v1107 = vpack.c.b16 %v815, %v811
    %v1108 = vpack.c.b16 %v816, %v812
    %v1109 = vpack.c.b16 %v817, %v813
    %v1110 = vpack.c.b16 %v822, %v818
    %v1111 = vpack.c.b16 %v823, %v819
    %v1112 = vpack.c.b16 %v824, %v820
    %v1113 = vpack.c.b16 %v825, %v821
    %v1114 = vpack.c.b16 %v830, %v826
    %v1115 = vpack.c.b16 %v831, %v827
    %v1116 = vpack.c.b16 %v832, %v828
    %v1117 = vpack.c.b16 %v833, %v829
    %v1118 = vpack.c.b16 %v838, %v834
    %v1119 = vpack.c.b16 %v839, %v835
    %v1120 = vpack.c.b16 %v840, %v836
    %v1121 = vpack.c.b16 %v841, %v837
    %v1122 = vpack.c.b16 %v846, %v842
    %v1123 = vpack.c.b16 %v847, %v843
    %v1124 = vpack.c.b16 %v848, %v844
    %v1125 = vpack.c.b16 %v849, %v845
    %v1126 = vpack.c.b16 %v854, %v850
    %v1127 = vpack.c.b16 %v855, %v851
    %v1128 = vpack.c.b16 %v856, %v852
    %v1129 = vpack.c.b16 %v857, %v853
    %v1130 = vpack.c.b16 %v862, %v858
    %v1131 = vpack.c.b16 %v863, %v859
    %v1132 = vpack.c.b16 %v864, %v860
    %v1133 = vpack.c.b16 %v865, %v861
    %v1134 = vpack.c.b16 %v870, %v866
    %v1135 = vpack.c.b16 %v871, %v867
    %v1136 = vpack.c.b16 %v872, %v868
    %v1137 = vpack.c.b16 %v873, %v869
    %v1138 = vpack.c.b16 %v878, %v874
    %v1139 = vpack.c.b16 %v879, %v875
    %v1140 = vpack.c.b16 %v880, %v876
    %v1141 = vpack.c.b16 %v881, %v877
    %v1142 = vpack.c.b16 %v886, %v882
    %v1143 = vpack.c.b16 %v887, %v883
    %v1144 = vpack.c.b16 %v888, %v884
    %v1145 = vpack.c.b16 %v889, %v885
    %v1146 = vpack.c.b16 %v894, %v890
    %v1147 = vpack.c.b16 %v895, %v891
    %v1148 = vpack.c.b16 %v896, %v892
    %v1149 = vpack.c.b16 %v897, %v893
    %v1150 = vpack.c.b16 %v902, %v898
    %v1151 = vpack.c.b16 %v903, %v899
    %v1152 = vpack.c.b16 %v904, %v900
    %v1153 = vpack.c.b16 %v905, %v901
    %v1154 = vpack.c.b16 %v910, %v906
    %v1155 = vpack.c.b16 %v911, %v907
    %v1156 = vpack.c.b16 %v912, %v908
    %v1157 = vpack.c.b16 %v913, %v909
    %v1158 = vpack.c.b16 %v918, %v914
    %v1159 = vpack.c.b16 %v919, %v915
    %v1160 = vpack.c.b16 %v920, %v916
    %v1161 = vpack.c.b16 %v921, %v917
    %v1162 = vpack.c.b16 %v926, %v922
    %v1163 = vpack.c.b16 %v927, %v923
    %v1164 = vpack.c.b16 %v928, %v924
    %v1165 = vpack.c.b16 %v929, %v925
    %v1166 = vpack.c.b16 %v934, %v930
    %v1167 = vpack.c.b16 %v935, %v931
    %v1168 = vpack.c.b16 %v936, %v932
    %v1169 = vpack.c.b16 %v937, %v933
    %v1170 = vpack.c.b16 %v942, %v938
    %v1171 = vpack.c.b16 %v943, %v939
    %v1172 = vpack.c.b16 %v944, %v940
    %v1173 = vpack.c.b16 %v945, %v941
    %v1174 = vpack.c.b16 %v950, %v946
    %v1175 = vpack.c.b16 %v951, %v947
    %v1176 = vpack.c.b16 %v952, %v948
    %v1177 = vpack.c.b16 %v953, %v949
    %v1178 = vpack.c.b16 %v958, %v954
    %v1179 = vpack.c.b16 %v959, %v955
    %v1180 = vpack.c.b16 %v960, %v956
    %v1181 = vpack.c.b16 %v961, %v957
    %v1182 = vpack.c.b16 %v966, %v962
    %v1183 = vpack.c.b16 %v967, %v963
    %v1184 = vpack.c.b16 %v968, %v964
    %v1185 = vpack.c.b16 %v969, %v965
    %v1186 = vpack.c.b16 %v974, %v970
    %v1187 = vpack.c.b16 %v975, %v971
    %v1188 = vpack.c.b16 %v976, %v972
    %v1189 = vpack.c.b16 %v977, %v973
    %v1190 = vpack.c.b16 %v982, %v978
    %v1191 = vpack.c.b16 %v983, %v979
    %v1192 = vpack.c.b16 %v984, %v980
    %v1193 = vpack.c.b16 %v985, %v981
    %v1194 = vpack.c.b16 %v990, %v986
    %v1195 = vpack.c.b16 %v991, %v987
    %v1196 = vpack.c.b16 %v992, %v988
    %v1197 = vpack.c.b16 %v993, %v989
    %v1198 = vpack.c.b16 %v998, %v994
    %v1199 = vpack.c.b16 %v999, %v995
    %v1200 = vpack.c.b16 %v1000, %v996
    %v1201 = vpack.c.b16 %v1001, %v997
    %v1202 = vpack.c.b16 %v1006, %v1002
    %v1203 = vpack.c.b16 %v1007, %v1003
    %v1204 = vpack.c.b16 %v1008, %v1004
    %v1205 = vpack.c.b16 %v1009, %v1005
    %vm1402 = vcmask 130048
    %v1404 = vsel %vm1402, %v104, 0
    %1406 = vmatprep.subr.bf16.mxu0 %v1011
    %1407 = vmatpush1.bf16.msra.mxu0 %v1010
    %1408 = vmatprep.subr.bf16.mxu0 %v1015
    %1409 = vmatpush1.bf16.msra.mxu0 %v1014
    %1410 = vmatprep.subr.bf16.mxu0 %v1019
    %1411 = vmatpush1.bf16.msra.mxu0 %v1018
    %1412 = vmatprep.subr.bf16.mxu0 %v1023
    %1413 = vmatpush1.bf16.msra.mxu0 %v1022
    %1414 = vmatprep.subr.bf16.mxu0 %v1027
    %1415 = vmatpush1.bf16.msra.mxu0 %v1026
    %1416 = vmatprep.subr.bf16.mxu0 %v1031
    %1417 = vmatpush1.bf16.msra.mxu0 %v1030
    %1418 = vmatprep.subr.bf16.mxu0 %v1035
    %1419 = vmatpush1.bf16.msra.mxu0 %v1034
    %1420 = vmatprep.subr.bf16.mxu0 %v1039
    %1421 = vmatpush1.bf16.msra.mxu0 %v1038
    %1422 = vmatprep.subr.bf16.mxu0 %v1043
    %1423 = vmatpush1.bf16.msra.mxu0 %v1042
    %1424 = vmatprep.subr.bf16.mxu0 %v1047
    %1425 = vmatpush1.bf16.msra.mxu0 %v1046
    %1426 = vmatprep.subr.bf16.mxu0 %v1051
    %1427 = vmatpush1.bf16.msra.mxu0 %v1050
    %1428 = vmatprep.subr.bf16.mxu0 %v1055
    %1429 = vmatpush1.bf16.msra.mxu0 %v1054
    %1430 = vmatprep.subr.bf16.mxu0 %v1059
    %1431 = vmatpush1.bf16.msra.mxu0 %v1058
    %1432 = vmatprep.subr.bf16.mxu0 %v1063
    %1433 = vmatpush1.bf16.msra.mxu0 %v1062
    %1434 = vmatprep.subr.bf16.mxu0 %v1067
    %1435 = vmatpush1.bf16.msra.mxu0 %v1066
    %1436 = vmatprep.subr.bf16.mxu0 %v1071
    %1437 = vmatpush1.bf16.msra.mxu0 %v1070
    %1438 = vmatprep.mubr.bf16.mxu0 %v99
    %1439 = vmatmul.mubr.bf16.gmra.mrb[0].mxu0 %v98
    %v1440 = vpop.f32.mrb[0].mxu0
    %v1441 = vadd.f32 %v375, %v1440
    %v1442 = vpop.f32.mrb[0].mxu0
    %v1443 = vadd.f32 %v377, %v1442
    %v1444 = vpop.f32.mrb[0].mxu0
    %v1445 = vpop.f32.mrb[0].mxu0
    %1446 = vdwg.mxu0
    %1447 = vmatprep.subr.bf16.mxu0 %v1075
    %1448 = vmatpush1.bf16.msra.mxu0 %v1074
    %1449 = vmatprep.subr.bf16.mxu0 %v1079
    %1450 = vmatpush1.bf16.msra.mxu0 %v1078
    %1451 = vmatprep.subr.bf16.mxu0 %v1083
    %1452 = vmatpush1.bf16.msra.mxu0 %v1082
    %1453 = vmatprep.subr.bf16.mxu0 %v1087
    %1454 = vmatpush1.bf16.msra.mxu0 %v1086
    %1455 = vmatprep.subr.bf16.mxu0 %v1091
    %1456 = vmatpush1.bf16.msra.mxu0 %v1090
    %1457 = vmatprep.subr.bf16.mxu0 %v1095
    %1458 = vmatpush1.bf16.msra.mxu0 %v1094
    %1459 = vmatprep.subr.bf16.mxu0 %v1099
    %1460 = vmatpush1.bf16.msra.mxu0 %v1098
    %1461 = vmatprep.subr.bf16.mxu0 %v1103
    %1462 = vmatpush1.bf16.msra.mxu0 %v1102
    %1463 = vmatprep.subr.bf16.mxu0 %v1107
    %1464 = vmatpush1.bf16.msra.mxu0 %v1106
    %1465 = vmatprep.subr.bf16.mxu0 %v1111
    %1466 = vmatpush1.bf16.msra.mxu0 %v1110
    %1467 = vmatprep.subr.bf16.mxu0 %v1115
    %1468 = vmatpush1.bf16.msra.mxu0 %v1114
    %1469 = vmatprep.subr.bf16.mxu0 %v1119
    %1470 = vmatpush1.bf16.msra.mxu0 %v1118
    %1471 = vmatprep.subr.bf16.mxu0 %v1123
    %1472 = vmatpush1.bf16.msra.mxu0 %v1122
    %1473 = vmatprep.subr.bf16.mxu0 %v1127
    %1474 = vmatpush1.bf16.msra.mxu0 %v1126
    %1475 = vmatprep.subr.bf16.mxu0 %v1131
    %1476 = vmatpush1.bf16.msra.mxu0 %v1130
    %1477 = vmatprep.subr.bf16.mxu0 %v1135
    %1478 = vmatpush1.bf16.msra.mxu0 %v1134
    %1479 = vmatprep.mubr.bf16.mxu0 %v101
    %1480 = vmatmul.mubr.bf16.gmra.mrb[0].mxu0 %v100
    %v1481 = vpop.f32.mrb[0].mxu0
    %v1482 = vadd.f32 %v1441, %v1481
    %v1483 = vpop.f32.mrb[0].mxu0
    %v1484 = vadd.f32 %v1443, %v1483
    %v1485 = vpop.f32.mrb[0].mxu0
    %v1486 = vpop.f32.mrb[0].mxu0
    %1487 = vdwg.mxu0
    %1488 = vmatprep.subr.bf16.mxu0 %v1139
    %1489 = vmatpush1.bf16.msra.mxu0 %v1138
    %1490 = vmatprep.subr.bf16.mxu0 %v1143
    %1491 = vmatpush1.bf16.msra.mxu0 %v1142
    %1492 = vmatprep.subr.bf16.mxu0 %v1147
    %1493 = vmatpush1.bf16.msra.mxu0 %v1146
    %1494 = vmatprep.subr.bf16.mxu0 %v1151
    %1495 = vmatpush1.bf16.msra.mxu0 %v1150
    %1496 = vmatprep.subr.bf16.mxu0 %v1155
    %1497 = vmatpush1.bf16.msra.mxu0 %v1154
    %1498 = vmatprep.subr.bf16.mxu0 %v1159
    %1499 = vmatpush1.bf16.msra.mxu0 %v1158
    %1500 = vmatprep.subr.bf16.mxu0 %v1163
    %1501 = vmatpush1.bf16.msra.mxu0 %v1162
    %1502 = vmatprep.subr.bf16.mxu0 %v1167
    %1503 = vmatpush1.bf16.msra.mxu0 %v1166
    %1504 = vmatprep.subr.bf16.mxu0 %v1171
    %1505 = vmatpush1.bf16.msra.mxu0 %v1170
    %1506 = vmatprep.subr.bf16.mxu0 %v1175
    %1507 = vmatpush1.bf16.msra.mxu0 %v1174
    %1508 = vmatprep.subr.bf16.mxu0 %v1179
    %1509 = vmatpush1.bf16.msra.mxu0 %v1178
    %1510 = vmatprep.subr.bf16.mxu0 %v1183
    %1511 = vmatpush1.bf16.msra.mxu0 %v1182
    %1512 = vmatprep.subr.bf16.mxu0 %v1187
    %1513 = vmatpush1.bf16.msra.mxu0 %v1186
    %1514 = vmatprep.subr.bf16.mxu0 %v1191
    %1515 = vmatpush1.bf16.msra.mxu0 %v1190
    %1516 = vmatprep.subr.bf16.mxu0 %v1195
    %1517 = vmatpush1.bf16.msra.mxu0 %v1194
    %1518 = vmatprep.subr.bf16.mxu0 %v1199
    %1519 = vmatpush1.bf16.msra.mxu0 %v1198
    %1520 = vmatprep.mubr.bf16.mxu0 %v103
    %1521 = vmatmul.mubr.bf16.gmra.mrb[0].mxu0 %v102
    %v1522 = vpop.f32.mrb[0].mxu0
    %v1523 = vadd.f32 %v1482, %v1522
    %v1524 = vpop.f32.mrb[0].mxu0
    %v1525 = vadd.f32 %v1484, %v1524
    %v1526 = vpop.f32.mrb[0].mxu0
    %v1527 = vpop.f32.mrb[0].mxu0
    %1528 = vdwg.mxu0
    %1529 = vmatprep.subr.bf16.mxu0 %v1203
    %1530 = vmatpush1.bf16.msra.mxu0 %v1202
    %1531 = vmatprep.subr.bf16.mxu0 0
    %1532 = vmatpush1.bf16.msra.mxu0 0
    %1533 = vmatprep.subr.bf16.mxu0 0
    %1534 = vmatpush1.bf16.msra.mxu0 0
    %1535 = vmatprep.subr.bf16.mxu0 0
    %1536 = vmatpush1.bf16.msra.mxu0 0
    %1537 = vmatprep.subr.bf16.mxu0 0
    %1538 = vmatpush1.bf16.msra.mxu0 0
    %1539 = vmatprep.subr.bf16.mxu0 0
    %1540 = vmatpush1.bf16.msra.mxu0 0
    %1541 = vmatprep.subr.bf16.mxu0 0
    %1542 = vmatpush1.bf16.msra.mxu0 0
    %1543 = vmatprep.subr.bf16.mxu0 0
    %1544 = vmatpush1.bf16.msra.mxu0 0
    %1545 = vmatprep.subr.bf16.mxu0 0
    %1546 = vmatpush1.bf16.msra.mxu0 0
    %1547 = vmatprep.subr.bf16.mxu0 0
    %1548 = vmatpush1.bf16.msra.mxu0 0
    %1549 = vmatprep.subr.bf16.mxu0 0
    %1550 = vmatpush1.bf16.msra.mxu0 0
    %1551 = vmatprep.subr.bf16.mxu0 0
    %1552 = vmatpush1.bf16.msra.mxu0 0
    %1553 = vmatprep.subr.bf16.mxu0 0
    %1554 = vmatpush1.bf16.msra.mxu0 0
    %1555 = vmatprep.subr.bf16.mxu0 0
    %1556 = vmatpush1.bf16.msra.mxu0 0
    %1557 = vmatprep.subr.bf16.mxu0 0
    %1558 = vmatpush1.bf16.msra.mxu0 0
    %1559 = vmatprep.subr.bf16.mxu0 0
    %1560 = vmatpush1.bf16.msra.mxu0 0
    %1561 = vmatprep.mubr.bf16.mxu0 0
    %1562 = vmatmul.mubr.bf16.gmra.mrb[0].mxu0 %v1404
    %v1563 = vpop.f32.mrb[0].mxu0
    %v1564 = vadd.f32 %v1523, %v1563
    %v1565 = vpop.f32.mrb[0].mxu0
    %v1566 = vadd.f32 %v1525, %v1565
    %v1567 = vpop.f32.mrb[0].mxu0
    %v1568 = vpop.f32.mrb[0].mxu0
    %1569 = vdwg.mxu0
    %1570 = vmatprep.subr.bf16.mxu0 %v1013
    %1571 = vmatpush1.bf16.msra.mxu0 %v1012
    %1572 = vmatprep.subr.bf16.mxu0 %v1017
    %1573 = vmatpush1.bf16.msra.mxu0 %v1016
    %1574 = vmatprep.subr.bf16.mxu0 %v1021
    %1575 = vmatpush1.bf16.msra.mxu0 %v1020
    %1576 = vmatprep.subr.bf16.mxu0 %v1025
    %1577 = vmatpush1.bf16.msra.mxu0 %v1024
    %1578 = vmatprep.subr.bf16.mxu0 %v1029
    %1579 = vmatpush1.bf16.msra.mxu0 %v1028
    %1580 = vmatprep.subr.bf16.mxu0 %v1033
    %1581 = vmatpush1.bf16.msra.mxu0 %v1032
    %1582 = vmatprep.subr.bf16.mxu0 %v1037
    %1583 = vmatpush1.bf16.msra.mxu0 %v1036
    %1584 = vmatprep.subr.bf16.mxu0 %v1041
    %1585 = vmatpush1.bf16.msra.mxu0 %v1040
    %1586 = vmatprep.subr.bf16.mxu0 %v1045
    %1587 = vmatpush1.bf16.msra.mxu0 %v1044
    %1588 = vmatprep.subr.bf16.mxu0 %v1049
    %1589 = vmatpush1.bf16.msra.mxu0 %v1048
    %1590 = vmatprep.subr.bf16.mxu0 %v1053
    %1591 = vmatpush1.bf16.msra.mxu0 %v1052
    %1592 = vmatprep.subr.bf16.mxu0 %v1057
    %1593 = vmatpush1.bf16.msra.mxu0 %v1056
    %1594 = vmatprep.subr.bf16.mxu0 %v1061
    %1595 = vmatpush1.bf16.msra.mxu0 %v1060
    %1596 = vmatprep.subr.bf16.mxu0 %v1065
    %1597 = vmatpush1.bf16.msra.mxu0 %v1064
    %1598 = vmatprep.subr.bf16.mxu0 %v1069
    %1599 = vmatpush1.bf16.msra.mxu0 %v1068
    %1600 = vmatprep.subr.bf16.mxu0 %v1073
    %1601 = vmatpush1.bf16.msra.mxu0 %v1072
    %1602 = vmatprep.mubr.bf16.mxu0 %v99
    %1603 = vmatmul.mubr.bf16.gmra.mrb[0].mxu0 %v98
    %v1604 = vpop.f32.mrb[0].mxu0
    %v1605 = vadd.f32 %v416, %v1604
    %v1606 = vpop.f32.mrb[0].mxu0
    %v1607 = vadd.f32 %v418, %v1606
    %v1608 = vpop.f32.mrb[0].mxu0
    %v1609 = vpop.f32.mrb[0].mxu0
    %1610 = vdwg.mxu0
    %1611 = vmatprep.subr.bf16.mxu0 %v1077
    %1612 = vmatpush1.bf16.msra.mxu0 %v1076
    %1613 = vmatprep.subr.bf16.mxu0 %v1081
    %1614 = vmatpush1.bf16.msra.mxu0 %v1080
    %1615 = vmatprep.subr.bf16.mxu0 %v1085
    %1616 = vmatpush1.bf16.msra.mxu0 %v1084
    %1617 = vmatprep.subr.bf16.mxu0 %v1089
    %1618 = vmatpush1.bf16.msra.mxu0 %v1088
    %1619 = vmatprep.subr.bf16.mxu0 %v1093
    %1620 = vmatpush1.bf16.msra.mxu0 %v1092
    %1621 = vmatprep.subr.bf16.mxu0 %v1097
    %1622 = vmatpush1.bf16.msra.mxu0 %v1096
    %1623 = vmatprep.subr.bf16.mxu0 %v1101
    %1624 = vmatpush1.bf16.msra.mxu0 %v1100
    %1625 = vmatprep.subr.bf16.mxu0 %v1105
    %1626 = vmatpush1.bf16.msra.mxu0 %v1104
    %1627 = vmatprep.subr.bf16.mxu0 %v1109
    %1628 = vmatpush1.bf16.msra.mxu0 %v1108
    %1629 = vmatprep.subr.bf16.mxu0 %v1113
    %1630 = vmatpush1.bf16.msra.mxu0 %v1112
    %1631 = vmatprep.subr.bf16.mxu0 %v1117
    %1632 = vmatpush1.bf16.msra.mxu0 %v1116
    %1633 = vmatprep.subr.bf16.mxu0 %v1121
    %1634 = vmatpush1.bf16.msra.mxu0 %v1120
    %1635 = vmatprep.subr.bf16.mxu0 %v1125
    %1636 = vmatpush1.bf16.msra.mxu0 %v1124
    %1637 = vmatprep.subr.bf16.mxu0 %v1129
    %1638 = vmatpush1.bf16.msra.mxu0 %v1128
    %1639 = vmatprep.subr.bf16.mxu0 %v1133
    %1640 = vmatpush1.bf16.msra.mxu0 %v1132
    %1641 = vmatprep.subr.bf16.mxu0 %v1137
    %1642 = vmatpush1.bf16.msra.mxu0 %v1136
    %1643 = vmatprep.mubr.bf16.mxu0 %v101
    %1644 = vmatmul.mubr.bf16.gmra.mrb[0].mxu0 %v100
    %v1645 = vpop.f32.mrb[0].mxu0
    %v1646 = vadd.f32 %v1605, %v1645
    %v1647 = vpop.f32.mrb[0].mxu0
    %v1648 = vadd.f32 %v1607, %v1647
    %v1649 = vpop.f32.mrb[0].mxu0
    %v1650 = vpop.f32.mrb[0].mxu0
    %1651 = vdwg.mxu0
    %1652 = vmatprep.subr.bf16.mxu0 %v1141
    %1653 = vmatpush1.bf16.msra.mxu0 %v1140
    %1654 = vmatprep.subr.bf16.mxu0 %v1145
    %1655 = vmatpush1.bf16.msra.mxu0 %v1144
    %1656 = vmatprep.subr.bf16.mxu0 %v1149
    %1657 = vmatpush1.bf16.msra.mxu0 %v1148
    %1658 = vmatprep.subr.bf16.mxu0 %v1153
    %1659 = vmatpush1.bf16.msra.mxu0 %v1152
    %1660 = vmatprep.subr.bf16.mxu0 %v1157
    %1661 = vmatpush1.bf16.msra.mxu0 %v1156
    %1662 = vmatprep.subr.bf16.mxu0 %v1161
    %1663 = vmatpush1.bf16.msra.mxu0 %v1160
    %1664 = vmatprep.subr.bf16.mxu0 %v1165
    %1665 = vmatpush1.bf16.msra.mxu0 %v1164
    %1666 = vmatprep.subr.bf16.mxu0 %v1169
    %1667 = vmatpush1.bf16.msra.mxu0 %v1168
    %1668 = vmatprep.subr.bf16.mxu0 %v1173
    %1669 = vmatpush1.bf16.msra.mxu0 %v1172
    %1670 = vmatprep.subr.bf16.mxu0 %v1177
    %1671 = vmatpush1.bf16.msra.mxu0 %v1176
    %1672 = vmatprep.subr.bf16.mxu0 %v1181
    %1673 = vmatpush1.bf16.msra.mxu0 %v1180
    %1674 = vmatprep.subr.bf16.mxu0 %v1185
    %1675 = vmatpush1.bf16.msra.mxu0 %v1184
    %1676 = vmatprep.subr.bf16.mxu0 %v1189
    %1677 = vmatpush1.bf16.msra.mxu0 %v1188
    %1678 = vmatprep.subr.bf16.mxu0 %v1193
    %1679 = vmatpush1.bf16.msra.mxu0 %v1192
    %1680 = vmatprep.subr.bf16.mxu0 %v1197
    %1681 = vmatpush1.bf16.msra.mxu0 %v1196
    %1682 = vmatprep.subr.bf16.mxu0 %v1201
    %1683 = vmatpush1.bf16.msra.mxu0 %v1200
    %1684 = vmatprep.mubr.bf16.mxu0 %v103
    %1685 = vmatmul.mubr.bf16.gmra.mrb[0].mxu0 %v102
    %v1686 = vpop.f32.mrb[0].mxu0
    %v1687 = vadd.f32 %v1646, %v1686
    %v1688 = vpop.f32.mrb[0].mxu0
    %v1689 = vadd.f32 %v1648, %v1688
    %v1690 = vpop.f32.mrb[0].mxu0
    %v1691 = vpop.f32.mrb[0].mxu0
    %1692 = vdwg.mxu0
    %1693 = vmatprep.subr.bf16.mxu0 %v1205
    %1694 = vmatpush1.bf16.msra.mxu0 %v1204
    %1695 = vmatprep.subr.bf16.mxu0 0
    %1696 = vmatpush1.bf16.msra.mxu0 0
    %1697 = vmatprep.subr.bf16.mxu0 0
    %1698 = vmatpush1.bf16.msra.mxu0 0
    %1699 = vmatprep.subr.bf16.mxu0 0
    %1700 = vmatpush1.bf16.msra.mxu0 0
    %1701 = vmatprep.subr.bf16.mxu0 0
    %1702 = vmatpush1.bf16.msra.mxu0 0
    %1703 = vmatprep.subr.bf16.mxu0 0
    %1704 = vmatpush1.bf16.msra.mxu0 0
    %1705 = vmatprep.subr.bf16.mxu0 0
    %1706 = vmatpush1.bf16.msra.mxu0 0
    %1707 = vmatprep.subr.bf16.mxu0 0
    %1708 = vmatpush1.bf16.msra.mxu0 0
    %1709 = vmatprep.subr.bf16.mxu0 0
    %1710 = vmatpush1.bf16.msra.mxu0 0
    %1711 = vmatprep.subr.bf16.mxu0 0
    %1712 = vmatpush1.bf16.msra.mxu0 0
    %1713 = vmatprep.subr.bf16.mxu0 0
    %1714 = vmatpush1.bf16.msra.mxu0 0
    %1715 = vmatprep.subr.bf16.mxu0 0
    %1716 = vmatpush1.bf16.msra.mxu0 0
    %1717 = vmatprep.subr.bf16.mxu0 0
    %1718 = vmatpush1.bf16.msra.mxu0 0
    %1719 = vmatprep.subr.bf16.mxu0 0
    %1720 = vmatpush1.bf16.msra.mxu0 0
    %1721 = vmatprep.subr.bf16.mxu0 0
    %1722 = vmatpush1.bf16.msra.mxu0 0
    %1723 = vmatprep.subr.bf16.mxu0 0
    %1724 = vmatpush1.bf16.msra.mxu0 0
    %1725 = vmatprep.mubr.bf16.mxu0 0
    %1726 = vmatmul.mubr.bf16.gmra.mrb[0].mxu0 %v1404
    %v1727 = vpop.f32.mrb[0].mxu0
    %v1728 = vadd.f32 %v1687, %v1727
    %v1729 = vpop.f32.mrb[0].mxu0
    %v1730 = vadd.f32 %v1689, %v1729
    %v1731 = vpop.f32.mrb[0].mxu0
    %v1732 = vpop.f32.mrb[0].mxu0
    %1733 = vdwg.mxu0
    %v1734 = vld [vmem:[%s4] sm:$0xf]
    %v1736 = vlaneseq
    %v1737 = vshrl.u32 %v1736, 7
    %v1738 = vsub.s32 0, %v1737
    %v1739 = vrot.slane %v1734, %v1738
    %v1740 = vlaneseq
    %v1741 = vshrl.u32 %v1740, 7
    %v1742 = vsub.s32 1, %v1741
    %v1743 = vrot.slane %v1734, %v1742
    %v1744 = vlaneseq
    %v1745 = vshrl.u32 %v1744, 7
    %v1746 = vsub.s32 2, %v1745
    %v1747 = vrot.slane %v1734, %v1746
    %v1748 = vlaneseq
    %v1749 = vshrl.u32 %v1748, 7
    %v1750 = vsub.s32 3, %v1749
    %v1751 = vrot.slane %v1734, %v1750
    %v1756 = vadd.f32 %v1564, %v1739
    %v1757 = vadd.f32 %v1566, %v1743
    %v1758 = vadd.f32 %v1728, %v1747
    %v1759 = vadd.f32 %v1730, %v1751
    %v1760 = vmax.f32 %v1756, 0.0
    %v1761 = vmax.f32 %v1757, 0.0
    %v1762 = vmax.f32 %v1758, 0.0
    %v1763 = vmax.f32 %v1759, 0.0
    %v1764 = vpack.c.bf16 %v1760, %v1760
    %v1765 = vpack.c.bf16 %v1761, %v1761
    %v1766 = vpack.c.bf16 %v1762, %v1762
    %v1767 = vpack.c.bf16 %v1763, %v1763
    %v1768 = vld [vmem:[#allocation9] sm:$0xf]
    %v1769 = vld [vmem:[#allocation9 + $0x4] sm:$0xf]
    %v1770 = vld [vmem:[#allocation9 + $0x8] sm:$0xf]
    %v1771 = vld [vmem:[#allocation9 + $0xc] sm:$0xf]
    %v1772 = vld [vmem:[#allocation9 + $0x10] sm:$0xf]
    %v1773 = vld [vmem:[#allocation9 + $0x14] sm:$0xf]
    %v1774 = vld [vmem:[#allocation9 + $0x18] sm:$0xf]
    %v1775 = vld [vmem:[#allocation9 + $0x1c] sm:$0xf]
    %v1776 = vld [vmem:[#allocation9 + $0x20] sm:$0xf]
    %v1777 = vld [vmem:[#allocation9 + $0x24] sm:$0xf]
    %v1778 = vld [vmem:[#allocation9 + $0x28] sm:$0xf]
    %v1779 = vld [vmem:[#allocation9 + $0x2c] sm:$0xf]
    %v1780 = vld [vmem:[#allocation9 + $0x30] sm:$0xf]
    %v1781 = vld [vmem:[#allocation9 + $0x34] sm:$0xf]
    %v1782 = vld [vmem:[#allocation9 + $0x38] sm:$0xf]
    %v1783 = vld [vmem:[#allocation9 + $0x3c] sm:$0xf]
    %v1784 = vld [vmem:[#allocation9 + $0x40] sm:$0xf]
    %v1785 = vld [vmem:[#allocation9 + $0x44] sm:$0xf]
    %v1786 = vld [vmem:[#allocation9 + $0x48] sm:$0xf]
    %v1787 = vld [vmem:[#allocation9 + $0x4c] sm:$0xf]
    %v1788 = vld [vmem:[#allocation9 + $0x50] sm:$0xf]
    %v1789 = vld [vmem:[#allocation9 + $0x54] sm:$0xf]
    %v1790 = vld [vmem:[#allocation9 + $0x58] sm:$0xf]
    %v1791 = vld [vmem:[#allocation9 + $0x5c] sm:$0xf]
    %v1792 = vld [vmem:[#allocation9 + $0x60] sm:$0xf]
    %v1793 = vld [vmem:[#allocation9 + $0x64] sm:$0xf]
    %v1794 = vld [vmem:[#allocation9 + $0x68] sm:$0xf]
    %v1795 = vld [vmem:[#allocation9 + $0x6c] sm:$0xf]
    %v1796 = vld [vmem:[#allocation9 + $0x70] sm:$0xf]
    %v1797 = vld [vmem:[#allocation9 + $0x74] sm:$0xf]
    %v1798 = vld [vmem:[#allocation9 + $0x78] sm:$0xf]
    %v1799 = vld [vmem:[#allocation9 + $0x7c] sm:$0xf]
    %v1800 = vld [vmem:[#allocation9 + $0x80] sm:$0xf]
    %v1801 = vld [vmem:[#allocation9 + $0x84] sm:$0xf]
    %v1802 = vld [vmem:[#allocation9 + $0x88] sm:$0xf]
    %v1803 = vld [vmem:[#allocation9 + $0x8c] sm:$0xf]
    %v1804 = vld [vmem:[#allocation9 + $0x90] sm:$0xf]
    %v1805 = vld [vmem:[#allocation9 + $0x94] sm:$0xf]
    %v1806 = vld [vmem:[#allocation9 + $0x98] sm:$0xf]
    %v1807 = vld [vmem:[#allocation9 + $0x9c] sm:$0xf]
    %v1808 = vld [vmem:[#allocation9 + $0xa0] sm:$0xf]
    %v1809 = vld [vmem:[#allocation9 + $0xa4] sm:$0xf]
    %v1810 = vld [vmem:[#allocation9 + $0xa8] sm:$0xf]
    %v1811 = vld [vmem:[#allocation9 + $0xac] sm:$0xf]
    %v1812 = vld [vmem:[#allocation9 + $0xb0] sm:$0xf]
    %v1813 = vld [vmem:[#allocation9 + $0xb4] sm:$0xf]
    %v1814 = vld [vmem:[#allocation9 + $0xb8] sm:$0xf]
    %v1815 = vld [vmem:[#allocation9 + $0xbc] sm:$0xf]
    %v1816 = vld [vmem:[#allocation9 + $0xc0] sm:$0xf]
    %v1817 = vld [vmem:[#allocation9 + $0xc4] sm:$0xf]
    %v1818 = vld [vmem:[#allocation9 + $0xc8] sm:$0xf]
    %v1819 = vld [vmem:[#allocation9 + $0xcc] sm:$0xf]
    %v1820 = vld [vmem:[#allocation9 + $0xd0] sm:$0xf]
    %v1821 = vld [vmem:[#allocation9 + $0xd4] sm:$0xf]
    %v1822 = vld [vmem:[#allocation9 + $0xd8] sm:$0xf]
    %v1823 = vld [vmem:[#allocation9 + $0xdc] sm:$0xf]
    %v1824 = vld [vmem:[#allocation9 + $0xe0] sm:$0xf]
    %v1825 = vld [vmem:[#allocation9 + $0xe4] sm:$0xf]
    %v1826 = vld [vmem:[#allocation9 + $0xe8] sm:$0xf]
    %v1827 = vld [vmem:[#allocation9 + $0xec] sm:$0xf]
    %v1828 = vld [vmem:[#allocation9 + $0xf0] sm:$0xf]
    %v1829 = vld [vmem:[#allocation9 + $0xf4] sm:$0xf]
    %v1830 = vld [vmem:[#allocation9 + $0xf8] sm:$0xf]
    %v1831 = vld [vmem:[#allocation9 + $0xfc] sm:$0xf]
    %v1832 = vld [vmem:[%s6] sm:$0x1]
    %v1834 = vlaneseq
    %v1835 = vshrl.u32 %v1834, 7
    %v1836 = vsub.s32 0, %v1835
    %v1837 = vrot.slane %v1832, %v1836
    %v1903 = vunpack.c.l.b16 %v1768
    %v1904 = vunpack.c.l.b16 %v1769
    %v1905 = vunpack.c.l.b16 %v1770
    %v1906 = vunpack.c.l.b16 %v1771
    %v1907 = vunpack.c.l.b16 %v1772
    %v1908 = vunpack.c.l.b16 %v1773
    %v1909 = vunpack.c.l.b16 %v1774
    %v1910 = vunpack.c.l.b16 %v1775
    %v1911 = vunpack.c.l.b16 %v1776
    %v1912 = vunpack.c.l.b16 %v1777
    %v1913 = vunpack.c.l.b16 %v1778
    %v1914 = vunpack.c.l.b16 %v1779
    %v1915 = vunpack.c.l.b16 %v1780
    %v1916 = vunpack.c.l.b16 %v1781
    %v1917 = vunpack.c.l.b16 %v1782
    %v1918 = vunpack.c.l.b16 %v1783
    %v1919 = vunpack.c.l.b16 %v1784
    %v1920 = vunpack.c.l.b16 %v1785
    %v1921 = vunpack.c.l.b16 %v1786
    %v1922 = vunpack.c.l.b16 %v1787
    %v1923 = vunpack.c.l.b16 %v1788
    %v1924 = vunpack.c.l.b16 %v1789
    %v1925 = vunpack.c.l.b16 %v1790
    %v1926 = vunpack.c.l.b16 %v1791
    %v1927 = vunpack.c.l.b16 %v1792
    %v1928 = vunpack.c.l.b16 %v1793
    %v1929 = vunpack.c.l.b16 %v1794
    %v1930 = vunpack.c.l.b16 %v1795
    %v1931 = vunpack.c.l.b16 %v1796
    %v1932 = vunpack.c.l.b16 %v1797
    %v1933 = vunpack.c.l.b16 %v1798
    %v1934 = vunpack.c.l.b16 %v1799
    %v1935 = vunpack.c.l.b16 %v1800
    %v1936 = vunpack.c.l.b16 %v1801
    %v1937 = vunpack.c.l.b16 %v1802
    %v1938 = vunpack.c.l.b16 %v1803
    %v1939 = vunpack.c.l.b16 %v1804
    %v1940 = vunpack.c.l.b16 %v1805
    %v1941 = vunpack.c.l.b16 %v1806
    %v1942 = vunpack.c.l.b16 %v1807
    %v1943 = vunpack.c.l.b16 %v1808
    %v1944 = vunpack.c.l.b16 %v1809
    %v1945 = vunpack.c.l.b16 %v1810
    %v1946 = vunpack.c.l.b16 %v1811
    %v1947 = vunpack.c.l.b16 %v1812
    %v1948 = vunpack.c.l.b16 %v1813
    %v1949 = vunpack.c.l.b16 %v1814
    %v1950 = vunpack.c.l.b16 %v1815
    %v1951 = vunpack.c.l.b16 %v1816
    %v1952 = vunpack.c.l.b16 %v1817
    %v1953 = vunpack.c.l.b16 %v1818
    %v1954 = vunpack.c.l.b16 %v1819
    %v1955 = vunpack.c.l.b16 %v1820
    %v1956 = vunpack.c.l.b16 %v1821
    %v1957 = vunpack.c.l.b16 %v1822
    %v1958 = vunpack.c.l.b16 %v1823
    %v1959 = vunpack.c.l.b16 %v1824
    %v1960 = vunpack.c.l.b16 %v1825
    %v1961 = vunpack.c.l.b16 %v1826
    %v1962 = vunpack.c.l.b16 %v1827
    %v1963 = vunpack.c.l.b16 %v1828
    %v1964 = vunpack.c.l.b16 %v1829
    %v1965 = vunpack.c.l.b16 %v1830
    %v1966 = vunpack.c.l.b16 %v1831
    %v1967 = vpack.c.b16 %v1904, %v1903
    %v1968 = vpack.c.b16 %v1906, %v1905
    %v1969 = vpack.c.b16 %v1908, %v1907
    %v1970 = vpack.c.b16 %v1910, %v1909
    %v1971 = vpack.c.b16 %v1912, %v1911
    %v1972 = vpack.c.b16 %v1914, %v1913
    %v1973 = vpack.c.b16 %v1916, %v1915
    %v1974 = vpack.c.b16 %v1918, %v1917
    %v1975 = vpack.c.b16 %v1920, %v1919
    %v1976 = vpack.c.b16 %v1922, %v1921
    %v1977 = vpack.c.b16 %v1924, %v1923
    %v1978 = vpack.c.b16 %v1926, %v1925
    %v1979 = vpack.c.b16 %v1928, %v1927
    %v1980 = vpack.c.b16 %v1930, %v1929
    %v1981 = vpack.c.b16 %v1932, %v1931
    %v1982 = vpack.c.b16 %v1934, %v1933
    %v1983 = vpack.c.b16 %v1936, %v1935
    %v1984 = vpack.c.b16 %v1938, %v1937
    %v1985 = vpack.c.b16 %v1940, %v1939
    %v1986 = vpack.c.b16 %v1942, %v1941
    %v1987 = vpack.c.b16 %v1944, %v1943
    %v1988 = vpack.c.b16 %v1946, %v1945
    %v1989 = vpack.c.b16 %v1948, %v1947
    %v1990 = vpack.c.b16 %v1950, %v1949
    %v1991 = vpack.c.b16 %v1952, %v1951
    %v1992 = vpack.c.b16 %v1954, %v1953
    %v1993 = vpack.c.b16 %v1956, %v1955
    %v1994 = vpack.c.b16 %v1958, %v1957
    %v1995 = vpack.c.b16 %v1960, %v1959
    %v1996 = vpack.c.b16 %v1962, %v1961
    %v1997 = vpack.c.b16 %v1964, %v1963
    %v1998 = vpack.c.b16 %v1966, %v1965
    %2031 = vmatprep.subr.bf16.mxu0 0
    %2032 = vmatpush1.bf16.msra.mxu0 %v1967
    %2033 = vmatprep.subr.bf16.mxu0 0
    %2034 = vmatpush1.bf16.msra.mxu0 %v1968
    %2035 = vmatprep.subr.bf16.mxu0 0
    %2036 = vmatpush1.bf16.msra.mxu0 %v1969
    %2037 = vmatprep.subr.bf16.mxu0 0
    %2038 = vmatpush1.bf16.msra.mxu0 %v1970
    %2039 = vmatprep.subr.bf16.mxu0 0
    %2040 = vmatpush1.bf16.msra.mxu0 %v1971
    %2041 = vmatprep.subr.bf16.mxu0 0
    %2042 = vmatpush1.bf16.msra.mxu0 %v1972
    %2043 = vmatprep.subr.bf16.mxu0 0
    %2044 = vmatpush1.bf16.msra.mxu0 %v1973
    %2045 = vmatprep.subr.bf16.mxu0 0
    %2046 = vmatpush1.bf16.msra.mxu0 %v1974
    %2047 = vmatprep.subr.bf16.mxu0 0
    %2048 = vmatpush1.bf16.msra.mxu0 %v1975
    %2049 = vmatprep.subr.bf16.mxu0 0
    %2050 = vmatpush1.bf16.msra.mxu0 %v1976
    %2051 = vmatprep.subr.bf16.mxu0 0
    %2052 = vmatpush1.bf16.msra.mxu0 %v1977
    %2053 = vmatprep.subr.bf16.mxu0 0
    %2054 = vmatpush1.bf16.msra.mxu0 %v1978
    %2055 = vmatprep.subr.bf16.mxu0 0
    %2056 = vmatpush1.bf16.msra.mxu0 %v1979
    %2057 = vmatprep.subr.bf16.mxu0 0
    %2058 = vmatpush1.bf16.msra.mxu0 %v1980
    %2059 = vmatprep.subr.bf16.mxu0 0
    %2060 = vmatpush1.bf16.msra.mxu0 %v1981
    %2061 = vmatprep.subr.bf16.mxu0 0
    %2062 = vmatpush1.bf16.msra.mxu0 %v1982
    %2063 = vmatprep.mubr.bf16.mxu0 %v1765
    %2064 = vmatmul.mubr.bf16.gmra.mrb[0].mxu0 %v1764
    %v2065 = vpop.f32.mrb[0].mxu0
    %v2066 = vadd.f32 %v1837, %v2065
    %v2067 = vpop.f32.mrb[0].mxu0
    %v2068 = vpop.f32.mrb[0].mxu0
    %v2069 = vpop.f32.mrb[0].mxu0
    %2070 = vdwg.mxu0
    %2071 = vmatprep.subr.bf16.mxu0 0
    %2072 = vmatpush1.bf16.msra.mxu0 %v1983
    %2073 = vmatprep.subr.bf16.mxu0 0
    %2074 = vmatpush1.bf16.msra.mxu0 %v1984
    %2075 = vmatprep.subr.bf16.mxu0 0
    %2076 = vmatpush1.bf16.msra.mxu0 %v1985
    %2077 = vmatprep.subr.bf16.mxu0 0
    %2078 = vmatpush1.bf16.msra.mxu0 %v1986
    %2079 = vmatprep.subr.bf16.mxu0 0
    %2080 = vmatpush1.bf16.msra.mxu0 %v1987
    %2081 = vmatprep.subr.bf16.mxu0 0
    %2082 = vmatpush1.bf16.msra.mxu0 %v1988
    %2083 = vmatprep.subr.bf16.mxu0 0
    %2084 = vmatpush1.bf16.msra.mxu0 %v1989
    %2085 = vmatprep.subr.bf16.mxu0 0
    %2086 = vmatpush1.bf16.msra.mxu0 %v1990
    %2087 = vmatprep.subr.bf16.mxu0 0
    %2088 = vmatpush1.bf16.msra.mxu0 %v1991
    %2089 = vmatprep.subr.bf16.mxu0 0
    %2090 = vmatpush1.bf16.msra.mxu0 %v1992
    %2091 = vmatprep.subr.bf16.mxu0 0
    %2092 = vmatpush1.bf16.msra.mxu0 %v1993
    %2093 = vmatprep.subr.bf16.mxu0 0
    %2094 = vmatpush1.bf16.msra.mxu0 %v1994
    %2095 = vmatprep.subr.bf16.mxu0 0
    %2096 = vmatpush1.bf16.msra.mxu0 %v1995
    %2097 = vmatprep.subr.bf16.mxu0 0
    %2098 = vmatpush1.bf16.msra.mxu0 %v1996
    %2099 = vmatprep.subr.bf16.mxu0 0
    %2100 = vmatpush1.bf16.msra.mxu0 %v1997
    %2101 = vmatprep.subr.bf16.mxu0 0
    %2102 = vmatpush1.bf16.msra.mxu0 %v1998
    %2103 = vmatprep.mubr.bf16.mxu0 %v1767
    %2104 = vmatmul.mubr.bf16.gmra.mrb[0].mxu0 %v1766
    %v2105 = vpop.f32.mrb[0].mxu0
    %v2106 = vadd.f32 %v2066, %v2105
    %v2107 = vpop.f32.mrb[0].mxu0
    %v2108 = vpop.f32.mrb[0].mxu0
    %v2109 = vpop.f32.mrb[0].mxu0
    %2110 = vdwg.mxu0
    %2111 = vst [vmem:[%s7] sm:$0xff] %v2106
    // Predicated region
    $region50: #{encoder_forward.1} parent=1 // pred_check
      _
    $region51: #{encoder_forward.1} parent=1 // pred_check_branch
      %2113 = sbr.rel (0) target = $region53
    $region52: #{encoder_forward.1} parent=1 // pred_region
      _
    $region53: #{encoder_forward.1} parent=1 // pred_fallthru
      _
    // Predicated region
    $region54: #{encoder_forward.1} parent=1 // pred_check
      _
    $region55: #{encoder_forward.1} parent=1 // pred_check_branch
      %2115 = sbr.rel (0) target = $region57
    $region56: #{encoder_forward.1} parent=1 // pred_region
      _
    $region57: #{encoder_forward.1} parent=1 // pred_fallthru
      _
    %2116 = vsyncpa [#allocation3], 1
    %2117 = vsyncpa [#allocation5], 1
    %2118 = vsyncpa [#allocation8], 1

</llo_original>
